<compile_context>
chip_gen: v7x
topology: tpu7x:2x2x1
jax: 0.10.0
libtpu: 0.0.40
codegen_flags: <defaults>
</compile_context>

<pallas_src>
import functools

import jax
import jax.numpy as jnp
from jax.experimental import pallas as pl
from jax.experimental.pallas import tpu as pltpu


def _round_up(x, m):
    return (x + m - 1) // m * m


# ----------------------------------------------------------------------------
# Fused bottleneck kernel (one batch element per grid step, channel-first)
# ----------------------------------------------------------------------------
def _bottleneck_kernel(xs_ref, w1_ref, s1_ref, b1_ref,
                       w2_ref, s2_ref, b2_ref,
                       w3_ref, s3_ref, b3_ref,
                       wsc_ref, ssc_ref, bsc_ref,
                       o_ref, out1_ref, patch_ref,
                       *, Cp, Wo, M, Mp, TM, Hp):
    f32 = jnp.float32
    x = xs_ref[...]                                             # (Cin, Mp)

    # ---- conv1 (1x1) + bn1 + relu over the whole row --------------------
    # Result goes into a halo-padded resident scratch:
    #   columns [0, Hp)            : zero (top-of-image margin)
    #   columns [Hp, Hp+Mp)        : conv1 output (lanes >= M forced to zero)
    #   columns [Hp+Mp, Hp+Mp+Hp)  : zero (bottom-of-image margin)
    # so every shifted 3x3 tap below is a plain in-range slice.
    zmargin = jnp.zeros((Cp, Hp), out1_ref.dtype)
    out1_ref[:, pl.ds(0, Hp)] = zmargin
    out1_ref[:, pl.ds(Hp + Mp, Hp)] = zmargin
    h1 = jnp.dot(w1_ref[...], x, preferred_element_type=f32)    # (Cp, Mp)
    h1 = jnp.maximum(h1 * s1_ref[...] + b1_ref[...], 0.0)
    if Mp > M:   # zero the M..Mp lane padding (it would otherwise be relu(bias))
        lane = jax.lax.broadcasted_iota(jnp.int32, (1, Mp), 1)
        h1 = jnp.where(lane < M, h1, 0.0)
    out1_ref[:, pl.ds(Hp, Mp)] = h1.astype(out1_ref.dtype)

    # Hoisted constants for the tile loop (avoid re-broadcasting per iter).
    w2v, w3v, wscv = w2_ref[...], w3_ref[...], wsc_ref[...]
    s2v, b2v = s2_ref[...], b2_ref[...]
    s3v, b3v = s3_ref[...], b3_ref[...]
    sscv, bscv = ssc_ref[...], bsc_ref[...]
    jlane = jax.lax.broadcasted_iota(jnp.int32, (1, TM), 1)

    # ---- per M-tile: im2col -> conv2 -> conv3 -> shortcut -> residual ----
    for t0 in range(0, Mp, TM):                 # static unroll over tiles
        px = (jlane + t0) % Wo                  # image x-coordinate per lane
        left_ok = px != 0                       # dx = 0 reads column x-1
        right_ok = px != Wo - 1                 # dx = 2 reads column x+1

        # im2col: 9 shifted slices of the resident conv1 output.  Every patch
        # row is written in full (lane-dense, sublane-aligned at t*Cp) -> no
        # zero fill and no masked partial stores.
        for t in range(9):                      # static unroll: 9 taps
            dy, dx = divmod(t, 3)
            k = (dy - 1) * Wo + (dx - 1)
            v = out1_ref[:, pl.ds(Hp + t0 + k, TM)]             # (Cp, TM)
            if dx == 0:
                v = jnp.where(left_ok, v, 0.0)
            elif dx == 2:
                v = jnp.where(right_ok, v, 0.0)
            patch_ref[pl.ds(t * Cp, Cp), :] = v.astype(patch_ref.dtype)

        # conv2 (3x3) as ONE deep MXU matmul (K = 9*Cp), bn2 + relu.
        h2 = jnp.dot(w2v, patch_ref[...], preferred_element_type=f32)
        out2 = jnp.maximum(h2 * s2v + b2v, 0.0)                 # (Cp, TM) f32

        # conv3 (1x1) + bn3.
        h3 = jnp.dot(w3v, out2.astype(w3v.dtype), preferred_element_type=f32)
        h3 = h3 * s3v + b3v                                     # (Cout, TM)

        # shortcut 1x1 conv + bn on this tile's input columns.
        idt = jnp.dot(wscv, x[:, t0:t0 + TM], preferred_element_type=f32)
        idt = idt * sscv + bscv

        # residual add + relu, lane-dense aligned store.
        o_ref[:, pl.ds(t0, TM)] = jnp.maximum(h3 + idt, 0.0).astype(o_ref.dtype)


# ----------------------------------------------------------------------------
# Wrapper: NCHW in / NCHW out (no transposes — channel-first kernel layout)
# ----------------------------------------------------------------------------
def bottleneck_block(x_nchw, params, stride, *,
                     compute_dtype=jnp.bfloat16, out_dtype=None):
    if out_dtype is None:
        out_dtype = compute_dtype
    f32 = jnp.float32
    N, Cin, H, W = x_nchw.shape
    C = params["w1"].shape[1]
    Cout = params["w3"].shape[1]

    # 1x1 conv with stride == spatial subsample of the input.
    xs = x_nchw[:, :, ::stride, ::stride]
    Ho, Wo = xs.shape[2], xs.shape[3]
    M = Ho * Wo

    # --- hardware-aligned sizes ------------------------------------------
    # Lane tile TM: multiple of 128, <= 512, chosen to minimize padding of M.
    # Channel padding Cp: multiple of 16 so every im2col tap row start (t*Cp)
    # is sublane-aligned for bf16 (also valid for f32).
    cands = (512, 384, 256, 128)
    min_mp = min(_round_up(M, c) for c in cands)
    TM = max(c for c in cands if _round_up(M, c) == min_mp)
    Mp = _round_up(M, TM)
    Hp = _round_up(Wo + 1, 128)     # 3x3 halo margin, rounded for aligned stores
    Cp = _round_up(C, 16)

    cdt = compute_dtype
    xs = jnp.zeros((N, Cin, Mp), cdt).at[:, :, :M].set(
        xs.reshape(N, Cin, M).astype(cdt))

    # conv1 weights channel-first, zero-padded to Cp rows; padded channels get
    # scale=bias=0 so they stay exactly 0 after bn + relu.
    w1 = jnp.zeros((Cp, Cin), cdt).at[:C].set(params["w1"].T.astype(cdt))
    s1 = jnp.zeros((Cp, 1), f32).at[:C, 0].set(params["s1"])
    b1 = jnp.zeros((Cp, 1), f32).at[:C, 0].set(params["b1"])

    # conv2 weights -> (Cp, 9*Cp):  w2_cf[co, t*Cp + ci] = w2[dy, dx, ci, co]
    w2t = jnp.transpose(params["w2"], (3, 0, 1, 2)).reshape(C, 9, C)
    w2 = jnp.zeros((Cp, 9, Cp), cdt).at[:C, :, :C].set(w2t.astype(cdt))
    w2 = w2.reshape(Cp, 9 * Cp)
    s2 = jnp.zeros((Cp, 1), f32).at[:C, 0].set(params["s2"])
    b2 = jnp.zeros((Cp, 1), f32).at[:C, 0].set(params["b2"])

    # conv3 (padded input channels contribute zero).
    w3 = jnp.zeros((Cout, Cp), cdt).at[:, :C].set(params["w3"].T.astype(cdt))
    s3 = params["s3"].astype(f32)[:, None]
    b3 = params["b3"].astype(f32)[:, None]

    # shortcut: projection conv, or identity expressed as an identity matmul.
    if params.get("w_sc") is not None:
        wsc = params["w_sc"].T.astype(cdt)
        ssc = params["s_sc"].astype(f32)[:, None]
        bsc = params["b_sc"].astype(f32)[:, None]
    else:
        assert stride == 1 and Cin == Cout, (
            "identity shortcut requires stride == 1 and "
            "in_channels == channels * expansion")
        wsc = jnp.eye(Cout, Cin, dtype=cdt)
        ssc = jnp.ones((Cout, 1), f32)
        bsc = jnp.zeros((Cout, 1), f32)

    kernel = functools.partial(_bottleneck_kernel, Cp=Cp, Wo=Wo,
                               M=M, Mp=Mp, TM=TM, Hp=Hp)

    # VMEM budget: double-buffered operand blocks + resident scratches
    # (+2x headroom for compiler temporaries, e.g. the f32 conv1 row).
    cb = jnp.dtype(cdt).itemsize
    ob = jnp.dtype(out_dtype).itemsize
    block_bytes = (Cin * Mp * cb                       # input row
                   + Cp * Cin * cb + 2 * Cp * 4        # w1, s1, b1
                   + Cp * 9 * Cp * cb + 2 * Cp * 4     # w2, s2, b2
                   + Cout * Cp * cb + 2 * Cout * 4     # w3, s3, b3
                   + Cout * Cin * cb + 2 * Cout * 4    # w_sc, s_sc, b_sc
                   + Cout * Mp * ob)                   # output row
    scratch_bytes = Cp * (Mp + 2 * Hp) * cb + 9 * Cp * TM * cb
    vmem_limit = min(128 << 20,
                     max(32 << 20, int(2.0 * (2 * block_bytes + scratch_bytes))))

    const = lambda n: (0, 0)                           # weights stay VMEM-resident
    out = pl.pallas_call(
        kernel,
        out_shape=jax.ShapeDtypeStruct((N, Cout, Mp), out_dtype),
        grid=(N,),
        in_specs=[
            pl.BlockSpec((None, Cin, Mp), lambda n: (n, 0, 0)),
            pl.BlockSpec((Cp, Cin), const),
            pl.BlockSpec((Cp, 1), const),
            pl.BlockSpec((Cp, 1), const),
            pl.BlockSpec((Cp, 9 * Cp), const),
            pl.BlockSpec((Cp, 1), const),
            pl.BlockSpec((Cp, 1), const),
            pl.BlockSpec((Cout, Cp), const),
            pl.BlockSpec((Cout, 1), const),
            pl.BlockSpec((Cout, 1), const),
            pl.BlockSpec((Cout, Cin), const),
            pl.BlockSpec((Cout, 1), const),
            pl.BlockSpec((Cout, 1), const),
        ],
        out_specs=pl.BlockSpec((None, Cout, Mp), lambda n: (n, 0, 0)),
        scratch_shapes=[
            pltpu.VMEM((Cp, Hp + Mp + Hp), cdt),   # halo-padded conv1 output
            pltpu.VMEM((9 * Cp, TM), cdt),         # im2col patch for one tile
        ],
        compiler_params=pltpu.CompilerParams(
            dimension_semantics=("parallel",),     # batch shards across TCs on v7x
            vmem_limit_bytes=vmem_limit),
    )(xs, w1, s1, b1, w2, s2, b2, w3, s3, b3, wsc, ssc, bsc)

    return out[:, :, :M].reshape(N, Cout, Ho, Wo)     # strip lane padding (NCHW)


# ----------------------------------------------------------------------------
# Pure-JAX reference (for correctness check)
# ----------------------------------------------------------------------------
def bottleneck_block_ref(x_nchw, params, stride):
    x = jnp.transpose(x_nchw, (0, 2, 3, 1))

    def conv(inp, w_hwio, s, pad):
        return jax.lax.conv_general_dilated(
            inp, w_hwio, (s, s), pad,
            dimension_numbers=("NHWC", "HWIO", "NHWC"))

    out = conv(x, params["w1"][None, None], stride, "VALID")
    out = jnp.maximum(out * params["s1"] + params["b1"], 0.0)
    out = conv(out, params["w2"], 1, ((1, 1), (1, 1)))
    out = jnp.maximum(out * params["s2"] + params["b2"], 0.0)
    out = conv(out, params["w3"][None, None], 1, "VALID")
    out = out * params["s3"] + params["b3"]
    idt = conv(x, params["w_sc"][None, None], stride, "VALID")
    idt = idt * params["s_sc"] + params["b_sc"]
    out = jnp.maximum(out + idt, 0.0)
    return jnp.transpose(out, (0, 3, 1, 2))


# ----------------------------------------------------------------------------
# Parameter init (deterministic, folds BatchNorm into scale/bias)
# ----------------------------------------------------------------------------
def fold_bn(key, c, eps=1e-5):
    k1, k2, k3, k4 = jax.random.split(key, 4)
    gamma = jax.random.uniform(k1, (c,), jnp.float32, 0.5, 1.5)
    beta = jax.random.normal(k2, (c,), jnp.float32) * 0.1
    mean = jax.random.normal(k3, (c,), jnp.float32) * 0.1
    var = jax.random.uniform(k4, (c,), jnp.float32, 0.5, 1.5)
    scale = gamma / jnp.sqrt(var + eps)
    bias = beta - mean * scale
    return scale, bias


def make_params(key, in_ch, channels, expansion):
    cout = channels * expansion
    keys = jax.random.split(key, 8)
    params = {}
    params["w1"] = jax.random.normal(keys[0], (in_ch, channels), jnp.float32) * 0.1
    params["s1"], params["b1"] = fold_bn(keys[1], channels)
    params["w2"] = jax.random.normal(keys[2], (3, 3, channels, channels), jnp.float32) * 0.1
    params["s2"], params["b2"] = fold_bn(keys[3], channels)
    params["w3"] = jax.random.normal(keys[4], (channels, cout), jnp.float32) * 0.1
    params["s3"], params["b3"] = fold_bn(keys[5], cout)
    params["w_sc"] = jax.random.normal(keys[6], (in_ch, cout), jnp.float32) * 0.1
    params["s_sc"], params["b_sc"] = fold_bn(keys[7], cout)
    return params


# ----------------------------------------------------------------------------
if __name__ == "__main__":
    key = jax.random.PRNGKey(0)
    k_x, k_p = jax.random.split(key)

    N, in_ch, H, W = 2, 4, 16, 16
    channels, expansion, stride = 4, 4, 2

    x = jax.random.normal(k_x, (N, in_ch, H, W), jnp.float32)   # NCHW, like PyTorch
    params = make_params(k_p, in_ch, channels, expansion)

    ref = jax.block_until_ready(bottleneck_block_ref(x, params, stride))

    # 1) f32 compute path: tight check (catches indexing / masking bugs).
    out_f32 = jax.block_until_ready(jax.jit(
        lambda xx: bottleneck_block(xx, params, stride,
                                    compute_dtype=jnp.float32))(x))
    assert out_f32.shape == (N, channels * expansion, H // stride, W // stride), out_f32.shape
    assert jnp.allclose(out_f32, ref, atol=1e-3, rtol=1e-3), \
        float(jnp.max(jnp.abs(out_f32 - ref)))

    # 2) bf16 compute path (default, MXU-rate + half the DMA/scratch bytes):
    #    looser tolerance accounts for bf16 operand rounding through 3 convs.
    out_bf16 = jax.block_until_ready(jax.jit(
        lambda xx: bottleneck_block(xx, params, stride))(x)).astype(jnp.float32)
    assert out_bf16.shape == (N, channels * expansion, H // stride, W // stride)
    assert jnp.allclose(out_bf16, ref, atol=5e-2, rtol=5e-2), \
        float(jnp.max(jnp.abs(out_bf16 - ref)))

    print("KERNEL_OK")
</pallas_src>

<mosaic_0001>
module attributes {stable_mosaic.version = 11 : i64} {
  func.func @_bottleneck_kernel(%arg0: i32, %arg1: memref<1x4x128xf32, #tpu.memory_space<vmem>>, %arg2: memref<16x4xf32, #tpu.memory_space<vmem>>, %arg3: memref<16x1xf32, #tpu.memory_space<vmem>>, %arg4: memref<16x1xf32, #tpu.memory_space<vmem>>, %arg5: memref<16x144xf32, #tpu.memory_space<vmem>>, %arg6: memref<16x1xf32, #tpu.memory_space<vmem>>, %arg7: memref<16x1xf32, #tpu.memory_space<vmem>>, %arg8: memref<16x16xf32, #tpu.memory_space<vmem>>, %arg9: memref<16x1xf32, #tpu.memory_space<vmem>>, %arg10: memref<16x1xf32, #tpu.memory_space<vmem>>, %arg11: memref<16x4xf32, #tpu.memory_space<vmem>>, %arg12: memref<16x1xf32, #tpu.memory_space<vmem>>, %arg13: memref<16x1xf32, #tpu.memory_space<vmem>>, %arg14: memref<1x16x128xf32, #tpu.memory_space<vmem>>, %arg15: memref<16x384xf32, #tpu.memory_space<vmem>>, %arg16: memref<144x128xf32, #tpu.memory_space<vmem>>) attributes {dimension_semantics = [#tpu.dimension_semantics<parallel>], iteration_bounds = array<i64: 2>, scalar_prefetch = 0 : i64, scratch_operands = 2 : i64, tpu.core_type = #tpu.core_type<tc>, window_params = [{transform_indices = @transform_0, window_bounds = array<i64: 1, 4, 128>}, {pipeline_mode = #tpu.pipeline_mode<synchronous>, transform_indices = @transform_1, window_bounds = array<i64: 16, 4>}, {pipeline_mode = #tpu.pipeline_mode<synchronous>, transform_indices = @transform_2, window_bounds = array<i64: 16, 1>}, {pipeline_mode = #tpu.pipeline_mode<synchronous>, transform_indices = @transform_3, window_bounds = array<i64: 16, 1>}, {pipeline_mode = #tpu.pipeline_mode<synchronous>, transform_indices = @transform_4, window_bounds = array<i64: 16, 144>}, {pipeline_mode = #tpu.pipeline_mode<synchronous>, transform_indices = @transform_5, window_bounds = array<i64: 16, 1>}, {pipeline_mode = #tpu.pipeline_mode<synchronous>, transform_indices = @transform_6, window_bounds = array<i64: 16, 1>}, {pipeline_mode = #tpu.pipeline_mode<synchronous>, transform_indices = @transform_7, window_bounds = array<i64: 16, 16>}, {pipeline_mode = #tpu.pipeline_mode<synchronous>, transform_indices = @transform_8, window_bounds = array<i64: 16, 1>}, {pipeline_mode = #tpu.pipeline_mode<synchronous>, transform_indices = @transform_9, window_bounds = array<i64: 16, 1>}, {pipeline_mode = #tpu.pipeline_mode<synchronous>, transform_indices = @transform_10, window_bounds = array<i64: 16, 4>}, {pipeline_mode = #tpu.pipeline_mode<synchronous>, transform_indices = @transform_11, window_bounds = array<i64: 16, 1>}, {pipeline_mode = #tpu.pipeline_mode<synchronous>, transform_indices = @transform_12, window_bounds = array<i64: 16, 1>}, {transform_indices = @transform_13, window_bounds = array<i64: 1, 16, 128>}]} {
    %c0 = arith.constant 0 : index
    %c0_0 = arith.constant 0 : index
    %c0_1 = arith.constant 0 : index
    %0 = vector.load %arg1[%c0, %c0_0, %c0_1] : memref<1x4x128xf32, #tpu.memory_space<vmem>>, vector<1x4x128xf32>
    %1 = vector.shape_cast %0 : vector<1x4x128xf32> to vector<4x128xf32>
    %cst = arith.constant 0.000000e+00 : f32
    %2 = vector.broadcast %cst : f32 to vector<16x128xf32>
    %c0_2 = arith.constant 0 : index
    %c0_3 = arith.constant 0 : index
    %3 = vector.load %arg15[%c0_2, %c0_3] : memref<16x384xf32, #tpu.memory_space<vmem>>, vector<16x128xf32>
    tpu.vector_store %arg15[%c0_2, %c0_3], %2 {strides = array<i32>} : memref<16x384xf32, #tpu.memory_space<vmem>>, vector<16x128xf32>,
    %c0_4 = arith.constant 0 : index
    %c256 = arith.constant 256 : index
    %4 = vector.load %arg15[%c0_4, %c256] : memref<16x384xf32, #tpu.memory_space<vmem>>, vector<16x128xf32>
    tpu.vector_store %arg15[%c0_4, %c256], %2 {strides = array<i32>} : memref<16x384xf32, #tpu.memory_space<vmem>>, vector<16x128xf32>,
    %c0_5 = arith.constant 0 : index
    %c0_6 = arith.constant 0 : index
    %5 = vector.load %arg2[%c0_5, %c0_6] : memref<16x4xf32, #tpu.memory_space<vmem>>, vector<16x4xf32>
    %cst_7 = arith.constant dense<0.000000e+00> : vector<16x128xf32>
    %6 = tpu.matmul %5, %1, %cst_7 {dimension_numbers = #tpu.dot_dimension_numbers<[1], [0], [0], [1], [0, 0, 1, 1], [], []>} : vector<16x4xf32>, vector<4x128xf32>, vector<16x128xf32> -> vector<16x128xf32>
    %c0_8 = arith.constant 0 : index
    %c0_9 = arith.constant 0 : index
    %7 = vector.load %arg3[%c0_8, %c0_9] : memref<16x1xf32, #tpu.memory_space<vmem>>, vector<16x1xf32>
    %8 = vector.broadcast %7 : vector<16x1xf32> to vector<16x128xf32>
    %9 = arith.mulf %6, %8 : vector<16x128xf32>
    %c0_10 = arith.constant 0 : index
    %c0_11 = arith.constant 0 : index
    %10 = vector.load %arg4[%c0_10, %c0_11] : memref<16x1xf32, #tpu.memory_space<vmem>>, vector<16x1xf32>
    %11 = vector.broadcast %10 : vector<16x1xf32> to vector<16x128xf32>
    %12 = arith.addf %9, %11 : vector<16x128xf32>
    %cst_12 = arith.constant 0.000000e+00 : f32
    %13 = vector.broadcast %cst_12 : f32 to vector<16x128xf32>
    %14 = arith.maximumf %12, %13 : vector<16x128xf32>
    %15 = tpu.iota {dimensions = array<i32: 1>} : vector<1x128xi32>
    %c64_i32 = arith.constant 64 : i32
    %16 = vector.broadcast %c64_i32 : i32 to vector<1x128xi32>
    %17 = arith.cmpi slt, %15, %16 : vector<1x128xi32>
    %cst_13 = arith.constant 0.000000e+00 : f32
    %18 = vector.shape_cast %17 : vector<1x128xi1> to vector<1x128xi1>
    %19 = vector.broadcast %18 : vector<1x128xi1> to vector<16x128xi1>
    %20 = vector.broadcast %cst_13 : f32 to vector<16x128xf32>
    %21 = arith.select %19, %14, %20 : vector<16x128xi1>, vector<16x128xf32>
    %c0_14 = arith.constant 0 : index
    %c128 = arith.constant 128 : index
    %22 = vector.load %arg15[%c0_14, %c128] : memref<16x384xf32, #tpu.memory_space<vmem>>, vector<16x128xf32>
    tpu.vector_store %arg15[%c0_14, %c128], %21 {strides = array<i32>} : memref<16x384xf32, #tpu.memory_space<vmem>>, vector<16x128xf32>,
    %c0_15 = arith.constant 0 : index
    %c0_16 = arith.constant 0 : index
    %23 = vector.load %arg5[%c0_15, %c0_16] : memref<16x144xf32, #tpu.memory_space<vmem>>, vector<16x144xf32>
    %c0_17 = arith.constant 0 : index
    %c0_18 = arith.constant 0 : index
    %24 = vector.load %arg8[%c0_17, %c0_18] : memref<16x16xf32, #tpu.memory_space<vmem>>, vector<16x16xf32>
    %c0_19 = arith.constant 0 : index
    %c0_20 = arith.constant 0 : index
    %25 = vector.load %arg11[%c0_19, %c0_20] : memref<16x4xf32, #tpu.memory_space<vmem>>, vector<16x4xf32>
    %c0_21 = arith.constant 0 : index
    %c0_22 = arith.constant 0 : index
    %26 = vector.load %arg6[%c0_21, %c0_22] : memref<16x1xf32, #tpu.memory_space<vmem>>, vector<16x1xf32>
    %c0_23 = arith.constant 0 : index
    %c0_24 = arith.constant 0 : index
    %27 = vector.load %arg7[%c0_23, %c0_24] : memref<16x1xf32, #tpu.memory_space<vmem>>, vector<16x1xf32>
    %c0_25 = arith.constant 0 : index
    %c0_26 = arith.constant 0 : index
    %28 = vector.load %arg9[%c0_25, %c0_26] : memref<16x1xf32, #tpu.memory_space<vmem>>, vector<16x1xf32>
    %c0_27 = arith.constant 0 : index
    %c0_28 = arith.constant 0 : index
    %29 = vector.load %arg10[%c0_27, %c0_28] : memref<16x1xf32, #tpu.memory_space<vmem>>, vector<16x1xf32>
    %c0_29 = arith.constant 0 : index
    %c0_30 = arith.constant 0 : index
    %30 = vector.load %arg12[%c0_29, %c0_30] : memref<16x1xf32, #tpu.memory_space<vmem>>, vector<16x1xf32>
    %c0_31 = arith.constant 0 : index
    %c0_32 = arith.constant 0 : index
    %31 = vector.load %arg13[%c0_31, %c0_32] : memref<16x1xf32, #tpu.memory_space<vmem>>, vector<16x1xf32>
    %32 = tpu.iota {dimensions = array<i32: 1>} : vector<1x128xi32>
    %c0_i32 = arith.constant 0 : i32
    %33 = vector.broadcast %c0_i32 : i32 to vector<1x128xi32>
    %34 = arith.addi %32, %33 : vector<1x128xi32>
    %c8_i32 = arith.constant 8 : i32
    %c0_i32_33 = arith.constant 0 : i32
    %35 = arith.cmpi eq, %c8_i32, %c0_i32_33 : i32
    %c1_i32 = arith.constant 1 : i32
    %36 = arith.select %35, %c1_i32, %c8_i32 : i32
    %37 = vector.broadcast %36 : i32 to vector<1x128xi32>
    %38 = arith.remsi %34, %37 : vector<1x128xi32>
    %c0_i32_34 = arith.constant 0 : i32
    %39 = vector.broadcast %c0_i32_34 : i32 to vector<1x128xi32>
    %40 = arith.cmpi ne, %38, %39 : vector<1x128xi32>
    %c0_i32_35 = arith.constant 0 : i32
    %41 = vector.broadcast %c0_i32_35 : i32 to vector<1x128xi32>
    %42 = arith.cmpi slt, %38, %41 : vector<1x128xi32>
    %c0_i32_36 = arith.constant 0 : i32
    %43 = arith.cmpi slt, %36, %c0_i32_36 : i32
    %44 = vector.broadcast %43 : i1 to vector<1x128xi1>
    %45 = vector.broadcast %44 : vector<1x128xi1> to vector<1x128xi1>
    %46 = arith.xori %42, %45 : vector<1x128xi1>
    %47 = arith.andi %46, %40 : vector<1x128xi1>
    %48 = vector.broadcast %36 : i32 to vector<1x128xi32>
    %49 = arith.addi %38, %48 : vector<1x128xi32>
    %50 = arith.select %47, %49, %38 : vector<1x128xi1>, vector<1x128xi32>
    %c0_i32_37 = arith.constant 0 : i32
    %51 = vector.broadcast %c0_i32_37 : i32 to vector<1x128xi32>
    %52 = arith.cmpi ne, %50, %51 : vector<1x128xi32>
    %c7_i32 = arith.constant 7 : i32
    %53 = vector.broadcast %c7_i32 : i32 to vector<1x128xi32>
    %54 = arith.cmpi ne, %50, %53 : vector<1x128xi32>
    %c0_38 = arith.constant 0 : index
    %c119 = arith.constant 119 : index
    %55 = vector.load %arg15[%c0_38, %c119] : memref<16x384xf32, #tpu.memory_space<vmem>>, vector<16x128xf32>
    %cst_39 = arith.constant 0.000000e+00 : f32
    %56 = vector.shape_cast %52 : vector<1x128xi1> to vector<1x128xi1>
    %57 = vector.broadcast %56 : vector<1x128xi1> to vector<16x128xi1>
    %58 = vector.broadcast %cst_39 : f32 to vector<16x128xf32>
    %59 = arith.select %57, %55, %58 : vector<16x128xi1>, vector<16x128xf32>
    %c0_40 = arith.constant 0 : index
    %c0_41 = arith.constant 0 : index
    %60 = vector.load %arg16[%c0_40, %c0_41] : memref<144x128xf32, #tpu.memory_space<vmem>>, vector<16x128xf32>
    tpu.vector_store %arg16[%c0_40, %c0_41], %59 {strides = array<i32>} : memref<144x128xf32, #tpu.memory_space<vmem>>, vector<16x128xf32>,
    %c0_42 = arith.constant 0 : index
    %c120 = arith.constant 120 : index
    %61 = vector.load %arg15[%c0_42, %c120] : memref<16x384xf32, #tpu.memory_space<vmem>>, vector<16x128xf32>
    %c16 = arith.constant 16 : index
    %c0_43 = arith.constant 0 : index
    %62 = vector.load %arg16[%c16, %c0_43] : memref<144x128xf32, #tpu.memory_space<vmem>>, vector<16x128xf32>
    tpu.vector_store %arg16[%c16, %c0_43], %61 {strides = array<i32>} : memref<144x128xf32, #tpu.memory_space<vmem>>, vector<16x128xf32>,
    %c0_44 = arith.constant 0 : index
    %c121 = arith.constant 121 : index
    %63 = vector.load %arg15[%c0_44, %c121] : memref<16x384xf32, #tpu.memory_space<vmem>>, vector<16x128xf32>
    %cst_45 = arith.constant 0.000000e+00 : f32
    %64 = vector.shape_cast %54 : vector<1x128xi1> to vector<1x128xi1>
    %65 = vector.broadcast %64 : vector<1x128xi1> to vector<16x128xi1>
    %66 = vector.broadcast %cst_45 : f32 to vector<16x128xf32>
    %67 = arith.select %65, %63, %66 : vector<16x128xi1>, vector<16x128xf32>
    %c32 = arith.constant 32 : index
    %c0_46 = arith.constant 0 : index
    %68 = vector.load %arg16[%c32, %c0_46] : memref<144x128xf32, #tpu.memory_space<vmem>>, vector<16x128xf32>
    tpu.vector_store %arg16[%c32, %c0_46], %67 {strides = array<i32>} : memref<144x128xf32, #tpu.memory_space<vmem>>, vector<16x128xf32>,
    %c0_47 = arith.constant 0 : index
    %c127 = arith.constant 127 : index
    %69 = vector.load %arg15[%c0_47, %c127] : memref<16x384xf32, #tpu.memory_space<vmem>>, vector<16x128xf32>
    %cst_48 = arith.constant 0.000000e+00 : f32
    %70 = vector.shape_cast %52 : vector<1x128xi1> to vector<1x128xi1>
    %71 = vector.broadcast %70 : vector<1x128xi1> to vector<16x128xi1>
    %72 = vector.broadcast %cst_48 : f32 to vector<16x128xf32>
    %73 = arith.select %71, %69, %72 : vector<16x128xi1>, vector<16x128xf32>
    %c48 = arith.constant 48 : index
    %c0_49 = arith.constant 0 : index
    %74 = vector.load %arg16[%c48, %c0_49] : memref<144x128xf32, #tpu.memory_space<vmem>>, vector<16x128xf32>
    tpu.vector_store %arg16[%c48, %c0_49], %73 {strides = array<i32>} : memref<144x128xf32, #tpu.memory_space<vmem>>, vector<16x128xf32>,
    %c0_50 = arith.constant 0 : index
    %c128_51 = arith.constant 128 : index
    %75 = vector.load %arg15[%c0_50, %c128_51] : memref<16x384xf32, #tpu.memory_space<vmem>>, vector<16x128xf32>
    %c64 = arith.constant 64 : index
    %c0_52 = arith.constant 0 : index
    %76 = vector.load %arg16[%c64, %c0_52] : memref<144x128xf32, #tpu.memory_space<vmem>>, vector<16x128xf32>
    tpu.vector_store %arg16[%c64, %c0_52], %75 {strides = array<i32>} : memref<144x128xf32, #tpu.memory_space<vmem>>, vector<16x128xf32>,
    %c0_53 = arith.constant 0 : index
    %c129 = arith.constant 129 : index
    %77 = vector.load %arg15[%c0_53, %c129] : memref<16x384xf32, #tpu.memory_space<vmem>>, vector<16x128xf32>
    %cst_54 = arith.constant 0.000000e+00 : f32
    %78 = vector.shape_cast %54 : vector<1x128xi1> to vector<1x128xi1>
    %79 = vector.broadcast %78 : vector<1x128xi1> to vector<16x128xi1>
    %80 = vector.broadcast %cst_54 : f32 to vector<16x128xf32>
    %81 = arith.select %79, %77, %80 : vector<16x128xi1>, vector<16x128xf32>
    %c80 = arith.constant 80 : index
    %c0_55 = arith.constant 0 : index
    %82 = vector.load %arg16[%c80, %c0_55] : memref<144x128xf32, #tpu.memory_space<vmem>>, vector<16x128xf32>
    tpu.vector_store %arg16[%c80, %c0_55], %81 {strides = array<i32>} : memref<144x128xf32, #tpu.memory_space<vmem>>, vector<16x128xf32>,
    %c0_56 = arith.constant 0 : index
    %c135 = arith.constant 135 : index
    %83 = vector.load %arg15[%c0_56, %c135] : memref<16x384xf32, #tpu.memory_space<vmem>>, vector<16x128xf32>
    %cst_57 = arith.constant 0.000000e+00 : f32
    %84 = vector.shape_cast %52 : vector<1x128xi1> to vector<1x128xi1>
    %85 = vector.broadcast %84 : vector<1x128xi1> to vector<16x128xi1>
    %86 = vector.broadcast %cst_57 : f32 to vector<16x128xf32>
    %87 = arith.select %85, %83, %86 : vector<16x128xi1>, vector<16x128xf32>
    %c96 = arith.constant 96 : index
    %c0_58 = arith.constant 0 : index
    %88 = vector.load %arg16[%c96, %c0_58] : memref<144x128xf32, #tpu.memory_space<vmem>>, vector<16x128xf32>
    tpu.vector_store %arg16[%c96, %c0_58], %87 {strides = array<i32>} : memref<144x128xf32, #tpu.memory_space<vmem>>, vector<16x128xf32>,
    %c0_59 = arith.constant 0 : index
    %c136 = arith.constant 136 : index
    %89 = vector.load %arg15[%c0_59, %c136] : memref<16x384xf32, #tpu.memory_space<vmem>>, vector<16x128xf32>
    %c112 = arith.constant 112 : index
    %c0_60 = arith.constant 0 : index
    %90 = vector.load %arg16[%c112, %c0_60] : memref<144x128xf32, #tpu.memory_space<vmem>>, vector<16x128xf32>
    tpu.vector_store %arg16[%c112, %c0_60], %89 {strides = array<i32>} : memref<144x128xf32, #tpu.memory_space<vmem>>, vector<16x128xf32>,
    %c0_61 = arith.constant 0 : index
    %c137 = arith.constant 137 : index
    %91 = vector.load %arg15[%c0_61, %c137] : memref<16x384xf32, #tpu.memory_space<vmem>>, vector<16x128xf32>
    %cst_62 = arith.constant 0.000000e+00 : f32
    %92 = vector.shape_cast %54 : vector<1x128xi1> to vector<1x128xi1>
    %93 = vector.broadcast %92 : vector<1x128xi1> to vector<16x128xi1>
    %94 = vector.broadcast %cst_62 : f32 to vector<16x128xf32>
    %95 = arith.select %93, %91, %94 : vector<16x128xi1>, vector<16x128xf32>
    %c128_63 = arith.constant 128 : index
    %c0_64 = arith.constant 0 : index
    %96 = vector.load %arg16[%c128_63, %c0_64] : memref<144x128xf32, #tpu.memory_space<vmem>>, vector<16x128xf32>
    tpu.vector_store %arg16[%c128_63, %c0_64], %95 {strides = array<i32>} : memref<144x128xf32, #tpu.memory_space<vmem>>, vector<16x128xf32>,
    %c0_65 = arith.constant 0 : index
    %c0_66 = arith.constant 0 : index
    %97 = vector.load %arg16[%c0_65, %c0_66] : memref<144x128xf32, #tpu.memory_space<vmem>>, vector<144x128xf32>
    %cst_67 = arith.constant dense<0.000000e+00> : vector<16x128xf32>
    %98 = tpu.matmul %23, %97, %cst_67 {dimension_numbers = #tpu.dot_dimension_numbers<[1], [0], [0], [1], [0, 0, 1, 1], [], []>} : vector<16x144xf32>, vector<144x128xf32>, vector<16x128xf32> -> vector<16x128xf32>
    %99 = vector.broadcast %26 : vector<16x1xf32> to vector<16x128xf32>
    %100 = arith.mulf %98, %99 : vector<16x128xf32>
    %101 = vector.broadcast %27 : vector<16x1xf32> to vector<16x128xf32>
    %102 = arith.addf %100, %101 : vector<16x128xf32>
    %cst_68 = arith.constant 0.000000e+00 : f32
    %103 = vector.broadcast %cst_68 : f32 to vector<16x128xf32>
    %104 = arith.maximumf %102, %103 : vector<16x128xf32>
    %cst_69 = arith.constant dense<0.000000e+00> : vector<16x128xf32>
    %105 = tpu.matmul %24, %104, %cst_69 {dimension_numbers = #tpu.dot_dimension_numbers<[1], [0], [0], [1], [0, 0, 1, 1], [], []>} : vector<16x16xf32>, vector<16x128xf32>, vector<16x128xf32> -> vector<16x128xf32>
    %106 = vector.broadcast %28 : vector<16x1xf32> to vector<16x128xf32>
    %107 = arith.mulf %105, %106 : vector<16x128xf32>
    %108 = vector.broadcast %29 : vector<16x1xf32> to vector<16x128xf32>
    %109 = arith.addf %107, %108 : vector<16x128xf32>
    %cst_70 = arith.constant dense<0.000000e+00> : vector<16x128xf32>
    %110 = tpu.matmul %25, %1, %cst_70 {dimension_numbers = #tpu.dot_dimension_numbers<[1], [0], [0], [1], [0, 0, 1, 1], [], []>} : vector<16x4xf32>, vector<4x128xf32>, vector<16x128xf32> -> vector<16x128xf32>
    %111 = vector.broadcast %30 : vector<16x1xf32> to vector<16x128xf32>
    %112 = arith.mulf %110, %111 : vector<16x128xf32>
    %113 = vector.broadcast %31 : vector<16x1xf32> to vector<16x128xf32>
    %114 = arith.addf %112, %113 : vector<16x128xf32>
    %115 = arith.addf %109, %114 : vector<16x128xf32>
    %cst_71 = arith.constant 0.000000e+00 : f32
    %116 = vector.broadcast %cst_71 : f32 to vector<16x128xf32>
    %117 = arith.maximumf %115, %116 : vector<16x128xf32>
    %c0_72 = arith.constant 0 : index
    %c0_73 = arith.constant 0 : index
    %c0_74 = arith.constant 0 : index
    %118 = vector.load %arg14[%c0_72, %c0_73, %c0_74] : memref<1x16x128xf32, #tpu.memory_space<vmem>>, vector<1x16x128xf32>
    %119 = vector.shape_cast %118 : vector<1x16x128xf32> to vector<16x128xf32>
    %120 = vector.shape_cast %117 : vector<16x128xf32> to vector<1x16x128xf32>
    tpu.vector_store %arg14[%c0_72, %c0_73, %c0_74], %120 {strides = array<i32>} : memref<1x16x128xf32, #tpu.memory_space<vmem>>, vector<1x16x128xf32>,
    return
  }
  func.func @transform_0(%arg0: i32) -> (i32, i32, i32) {
    %c0_i32 = arith.constant 0 : i32
    %c0_i32_0 = arith.constant 0 : i32
    %c0_i32_1 = arith.constant 0 : i32
    return %arg0, %c0_i32, %c0_i32_0 : i32, i32, i32
  }
  func.func @transform_1(%arg0: i32) -> (i32, i32) {
    %c0_i32 = arith.constant 0 : i32
    %c0_i32_0 = arith.constant 0 : i32
    %c0_i32_1 = arith.constant 0 : i32
    return %c0_i32, %c0_i32_0 : i32, i32
  }
  func.func @transform_2(%arg0: i32) -> (i32, i32) {
    %c0_i32 = arith.constant 0 : i32
    %c0_i32_0 = arith.constant 0 : i32
    %c0_i32_1 = arith.constant 0 : i32
    return %c0_i32, %c0_i32_0 : i32, i32
  }
  func.func @transform_3(%arg0: i32) -> (i32, i32) {
    %c0_i32 = arith.constant 0 : i32
    %c0_i32_0 = arith.constant 0 : i32
    %c0_i32_1 = arith.constant 0 : i32
    return %c0_i32, %c0_i32_0 : i32, i32
  }
  func.func @transform_4(%arg0: i32) -> (i32, i32) {
    %c0_i32 = arith.constant 0 : i32
    %c0_i32_0 = arith.constant 0 : i32
    %c0_i32_1 = arith.constant 0 : i32
    return %c0_i32, %c0_i32_0 : i32, i32
  }
  func.func @transform_5(%arg0: i32) -> (i32, i32) {
    %c0_i32 = arith.constant 0 : i32
    %c0_i32_0 = arith.constant 0 : i32
    %c0_i32_1 = arith.constant 0 : i32
    return %c0_i32, %c0_i32_0 : i32, i32
  }
  func.func @transform_6(%arg0: i32) -> (i32, i32) {
    %c0_i32 = arith.constant 0 : i32
    %c0_i32_0 = arith.constant 0 : i32
    %c0_i32_1 = arith.constant 0 : i32
    return %c0_i32, %c0_i32_0 : i32, i32
  }
  func.func @transform_7(%arg0: i32) -> (i32, i32) {
    %c0_i32 = arith.constant 0 : i32
    %c0_i32_0 = arith.constant 0 : i32
    %c0_i32_1 = arith.constant 0 : i32
    return %c0_i32, %c0_i32_0 : i32, i32
  }
  func.func @transform_8(%arg0: i32) -> (i32, i32) {
    %c0_i32 = arith.constant 0 : i32
    %c0_i32_0 = arith.constant 0 : i32
    %c0_i32_1 = arith.constant 0 : i32
    return %c0_i32, %c0_i32_0 : i32, i32
  }
  func.func @transform_9(%arg0: i32) -> (i32, i32) {
    %c0_i32 = arith.constant 0 : i32
    %c0_i32_0 = arith.constant 0 : i32
    %c0_i32_1 = arith.constant 0 : i32
    return %c0_i32, %c0_i32_0 : i32, i32
  }
  func.func @transform_10(%arg0: i32) -> (i32, i32) {
    %c0_i32 = arith.constant 0 : i32
    %c0_i32_0 = arith.constant 0 : i32
    %c0_i32_1 = arith.constant 0 : i32
    return %c0_i32, %c0_i32_0 : i32, i32
  }
  func.func @transform_11(%arg0: i32) -> (i32, i32) {
    %c0_i32 = arith.constant 0 : i32
    %c0_i32_0 = arith.constant 0 : i32
    %c0_i32_1 = arith.constant 0 : i32
    return %c0_i32, %c0_i32_0 : i32, i32
  }
  func.func @transform_12(%arg0: i32) -> (i32, i32) {
    %c0_i32 = arith.constant 0 : i32
    %c0_i32_0 = arith.constant 0 : i32
    %c0_i32_1 = arith.constant 0 : i32
    return %c0_i32, %c0_i32_0 : i32, i32
  }
  func.func @transform_13(%arg0: i32) -> (i32, i32, i32) {
    %c0_i32 = arith.constant 0 : i32
    %c0_i32_0 = arith.constant 0 : i32
    %c0_i32_1 = arith.constant 0 : i32
    return %arg0, %c0_i32, %c0_i32_0 : i32, i32, i32
  }
}

</mosaic_0001>

<llo_original>
// kernel: _lambda_.1
$region0: #{_lambda_.1}
  #allocation0 [shape = 'u32[]', space=smem, size = 0x4, offset = 0x4, fixed_abs, tag = 'smem constant byte address 0x4 - core index']
  #allocation1 [shape = 'u32[144,128]{1,0:T(1,128)}', space=vmem, size = 0x12000, scoped, tag = 'internal scratch']
  #allocation2 [shape = 'f32[16,384]{1,0:T(8,128)}', space=vmem, size = 0x6000, scoped, tag = 'scratch operand']
  #allocation3 [shape = 'f32[144,128]{1,0:T(8,128)}', space=vmem, size = 0x12000, scoped, tag = 'scratch operand']
  %s0 = inlined_call_operand.vmem [shape: f32[2,4,128], index: 0, kind: input, shape index: {}]
  %s1 = inlined_call_operand.vmem [shape: f32[16,4], index: 1, kind: input, shape index: {}]
  %s2 = inlined_call_operand.vmem [shape: f32[16,1], index: 2, kind: input, shape index: {}]
  %s3 = inlined_call_operand.vmem [shape: f32[16,1], index: 3, kind: input, shape index: {}]
  %s4 = inlined_call_operand.vmem [shape: f32[16,144], index: 4, kind: input, shape index: {}]
  %s5 = inlined_call_operand.vmem [shape: f32[16,1], index: 5, kind: input, shape index: {}]
  %s6 = inlined_call_operand.vmem [shape: f32[16,1], index: 6, kind: input, shape index: {}]
  %s7 = inlined_call_operand.vmem [shape: f32[16,16], index: 7, kind: input, shape index: {}]
  %s8 = inlined_call_operand.vmem [shape: f32[16,1], index: 8, kind: input, shape index: {}]
  %s9 = inlined_call_operand.vmem [shape: f32[16,1], index: 9, kind: input, shape index: {}]
  %s10 = inlined_call_operand.vmem [shape: f32[16,4], index: 10, kind: input, shape index: {}]
  %s11 = inlined_call_operand.vmem [shape: f32[16,1], index: 11, kind: input, shape index: {}]
  %s12 = inlined_call_operand.vmem [shape: f32[16,1], index: 12, kind: input, shape index: {}]
  %s13 = inlined_call_operand.vmem [shape: f32[2,16,128], index: 13, kind: output, shape index: {}]
  %s14 = sld [smem:[#allocation0]]
  $region85: #{_lambda_.1} parent=0
    _
  %s16 = ssub.s32 1, %s14
  %s17 = scalar_select 0, %s16, %s14
  loop: start=0, step=1, limit=4
  $region2: #{_lambda_.1} parent=0 // loop_pre_header
    _
  $region3: #{_lambda_.1} parent=0 // loop_header
    %s19 = sphi 0, %s23
    %p20 = scmp.ge.s32.totalorder %s19, 4
    %s29 = sphi 0, %s31
    %s32 = sphi 0, %s29
    %s33 = sphi 0, %s32
    %s49 = sphi 0, %s33
    %s53 = sphi 0, %s53
    %s55 = sphi 0, %s53
    %s56 = sphi 0, %s55
    %s70 = sphi 0, %s56
    %s74 = sphi 0, %s74
    %s76 = sphi 0, %s74
    %s77 = sphi 0, %s76
    %s91 = sphi 0, %s77
    %s95 = sphi 0, %s95
    %s97 = sphi 0, %s95
    %s98 = sphi 0, %s97
    %s112 = sphi 0, %s98
    %s116 = sphi 0, %s116
    %s118 = sphi 0, %s116
    %s119 = sphi 0, %s118
    %s133 = sphi 0, %s119
    %s137 = sphi 0, %s137
    %s139 = sphi 0, %s137
    %s140 = sphi 0, %s139
    %s154 = sphi 0, %s140
    %s158 = sphi 0, %s158
    %s160 = sphi 0, %s158
    %s161 = sphi 0, %s160
    %s175 = sphi 0, %s161
    %s179 = sphi 0, %s179
    %s181 = sphi 0, %s179
    %s182 = sphi 0, %s181
    %s196 = sphi 0, %s182
    %s200 = sphi 0, %s200
    %s202 = sphi 0, %s200
    %s203 = sphi 0, %s202
    %s217 = sphi 0, %s203
    %s221 = sphi 0, %s221
    %s223 = sphi 0, %s221
    %s224 = sphi 0, %s223
    %s238 = sphi 0, %s224
    %s242 = sphi 0, %s242
    %s244 = sphi 0, %s242
    %s245 = sphi 0, %s244
    %s259 = sphi 0, %s245
    %s263 = sphi 0, %s263
    %s265 = sphi 0, %s263
    %s266 = sphi 0, %s265
    %s280 = sphi 0, %s266
    %s284 = sphi 0, %s284
    %s286 = sphi 0, %s284
    %s287 = sphi 0, %s286
    %s301 = sphi 0, %s287
    %s307 = sphi 0, %s309
    %s310 = sphi 0, %s307
    %s311 = sphi 0, %s310
    %s327 = sphi 0, %s311
  $region4: #{_lambda_.1} parent=0 // loop_header_branch
    %22 = sbr.rel (%p20) target = $region8
  $region5: #{_lambda_.1} parent=0 // loop_body
    %s24 = ssub.s32 %s19, 1
    %s25 = ssub.s32 %s19, 2
    %s26 = sadd.s32 %s19, 1
    %s27 = ssub.s32 %s19, %s26
    %p28 = scmp.eq.s32.totalorder %s27, 0
    %s30 = sadd.s32 %s29, 1
    %s31 = scalar_select %p28, %s29, %s30
    %p34 = pneg %p28
    %p35 = scmp.eq.s32.totalorder %s19, 1
    %p36 = por %p34, %p35
    %p37 = scmp.ne.s32.totalorder %s29, %s32
    %p38 = scmp.eq.s32.totalorder %s19, 0
    %p39 = por %p37, %p38
    %p40 = scmp.ne.s32.totalorder %s29, %s32
    %p41 = scmp.eq.s32.totalorder %s24, 1
    %p42 = por %p40, %p41
    %p43 = scmp.ne.s32.totalorder %s32, %s33
    %p44 = scmp.eq.s32.totalorder %s24, 0
    %p45 = por %p43, %p44
    %p46 = scmp.ne.s32.totalorder %s32, %s33
    %p47 = scmp.eq.s32.totalorder %s25, 1
    %p48 = por %p46, %p47
    %p50 = scmp.ne.s32.totalorder %s33, %s49
    %p51 = scmp.eq.s32.totalorder %s25, 0
    %p52 = por %p50, %p51
    %s54 = sadd.s32 %s53, 1
    %p57 = scmp.eq.s32.totalorder %s19, 1
    %p58 = scmp.ne.s32.totalorder %s53, %s55
    %p59 = scmp.eq.s32.totalorder %s19, 0
    %p60 = por %p58, %p59
    %p61 = scmp.ne.s32.totalorder %s53, %s55
    %p62 = scmp.eq.s32.totalorder %s24, 1
    %p63 = por %p61, %p62
    %p64 = scmp.ne.s32.totalorder %s55, %s56
    %p65 = scmp.eq.s32.totalorder %s24, 0
    %p66 = por %p64, %p65
    %p67 = scmp.ne.s32.totalorder %s55, %s56
    %p68 = scmp.eq.s32.totalorder %s25, 1
    %p69 = por %p67, %p68
    %p71 = scmp.ne.s32.totalorder %s56, %s70
    %p72 = scmp.eq.s32.totalorder %s25, 0
    %p73 = por %p71, %p72
    %s75 = sadd.s32 %s74, 1
    %p78 = scmp.eq.s32.totalorder %s19, 1
    %p79 = scmp.ne.s32.totalorder %s74, %s76
    %p80 = scmp.eq.s32.totalorder %s19, 0
    %p81 = por %p79, %p80
    %p82 = scmp.ne.s32.totalorder %s74, %s76
    %p83 = scmp.eq.s32.totalorder %s24, 1
    %p84 = por %p82, %p83
    %p85 = scmp.ne.s32.totalorder %s76, %s77
    %p86 = scmp.eq.s32.totalorder %s24, 0
    %p87 = por %p85, %p86
    %p88 = scmp.ne.s32.totalorder %s76, %s77
    %p89 = scmp.eq.s32.totalorder %s25, 1
    %p90 = por %p88, %p89
    %p92 = scmp.ne.s32.totalorder %s77, %s91
    %p93 = scmp.eq.s32.totalorder %s25, 0
    %p94 = por %p92, %p93
    %s96 = sadd.s32 %s95, 1
    %p99 = scmp.eq.s32.totalorder %s19, 1
    %p100 = scmp.ne.s32.totalorder %s95, %s97
    %p101 = scmp.eq.s32.totalorder %s19, 0
    %p102 = por %p100, %p101
    %p103 = scmp.ne.s32.totalorder %s95, %s97
    %p104 = scmp.eq.s32.totalorder %s24, 1
    %p105 = por %p103, %p104
    %p106 = scmp.ne.s32.totalorder %s97, %s98
    %p107 = scmp.eq.s32.totalorder %s24, 0
    %p108 = por %p106, %p107
    %p109 = scmp.ne.s32.totalorder %s97, %s98
    %p110 = scmp.eq.s32.totalorder %s25, 1
    %p111 = por %p109, %p110
    %p113 = scmp.ne.s32.totalorder %s98, %s112
    %p114 = scmp.eq.s32.totalorder %s25, 0
    %p115 = por %p113, %p114
    %s117 = sadd.s32 %s116, 1
    %p120 = scmp.eq.s32.totalorder %s19, 1
    %p121 = scmp.ne.s32.totalorder %s116, %s118
    %p122 = scmp.eq.s32.totalorder %s19, 0
    %p123 = por %p121, %p122
    %p124 = scmp.ne.s32.totalorder %s116, %s118
    %p125 = scmp.eq.s32.totalorder %s24, 1
    %p126 = por %p124, %p125
    %p127 = scmp.ne.s32.totalorder %s118, %s119
    %p128 = scmp.eq.s32.totalorder %s24, 0
    %p129 = por %p127, %p128
    %p130 = scmp.ne.s32.totalorder %s118, %s119
    %p131 = scmp.eq.s32.totalorder %s25, 1
    %p132 = por %p130, %p131
    %p134 = scmp.ne.s32.totalorder %s119, %s133
    %p135 = scmp.eq.s32.totalorder %s25, 0
    %p136 = por %p134, %p135
    %s138 = sadd.s32 %s137, 1
    %p141 = scmp.eq.s32.totalorder %s19, 1
    %p142 = scmp.ne.s32.totalorder %s137, %s139
    %p143 = scmp.eq.s32.totalorder %s19, 0
    %p144 = por %p142, %p143
    %p145 = scmp.ne.s32.totalorder %s137, %s139
    %p146 = scmp.eq.s32.totalorder %s24, 1
    %p147 = por %p145, %p146
    %p148 = scmp.ne.s32.totalorder %s139, %s140
    %p149 = scmp.eq.s32.totalorder %s24, 0
    %p150 = por %p148, %p149
    %p151 = scmp.ne.s32.totalorder %s139, %s140
    %p152 = scmp.eq.s32.totalorder %s25, 1
    %p153 = por %p151, %p152
    %p155 = scmp.ne.s32.totalorder %s140, %s154
    %p156 = scmp.eq.s32.totalorder %s25, 0
    %p157 = por %p155, %p156
    %s159 = sadd.s32 %s158, 1
    %p162 = scmp.eq.s32.totalorder %s19, 1
    %p163 = scmp.ne.s32.totalorder %s158, %s160
    %p164 = scmp.eq.s32.totalorder %s19, 0
    %p165 = por %p163, %p164
    %p166 = scmp.ne.s32.totalorder %s158, %s160
    %p167 = scmp.eq.s32.totalorder %s24, 1
    %p168 = por %p166, %p167
    %p169 = scmp.ne.s32.totalorder %s160, %s161
    %p170 = scmp.eq.s32.totalorder %s24, 0
    %p171 = por %p169, %p170
    %p172 = scmp.ne.s32.totalorder %s160, %s161
    %p173 = scmp.eq.s32.totalorder %s25, 1
    %p174 = por %p172, %p173
    %p176 = scmp.ne.s32.totalorder %s161, %s175
    %p177 = scmp.eq.s32.totalorder %s25, 0
    %p178 = por %p176, %p177
    %s180 = sadd.s32 %s179, 1
    %p183 = scmp.eq.s32.totalorder %s19, 1
    %p184 = scmp.ne.s32.totalorder %s179, %s181
    %p185 = scmp.eq.s32.totalorder %s19, 0
    %p186 = por %p184, %p185
    %p187 = scmp.ne.s32.totalorder %s179, %s181
    %p188 = scmp.eq.s32.totalorder %s24, 1
    %p189 = por %p187, %p188
    %p190 = scmp.ne.s32.totalorder %s181, %s182
    %p191 = scmp.eq.s32.totalorder %s24, 0
    %p192 = por %p190, %p191
    %p193 = scmp.ne.s32.totalorder %s181, %s182
    %p194 = scmp.eq.s32.totalorder %s25, 1
    %p195 = por %p193, %p194
    %p197 = scmp.ne.s32.totalorder %s182, %s196
    %p198 = scmp.eq.s32.totalorder %s25, 0
    %p199 = por %p197, %p198
    %s201 = sadd.s32 %s200, 1
    %p204 = scmp.eq.s32.totalorder %s19, 1
    %p205 = scmp.ne.s32.totalorder %s200, %s202
    %p206 = scmp.eq.s32.totalorder %s19, 0
    %p207 = por %p205, %p206
    %p208 = scmp.ne.s32.totalorder %s200, %s202
    %p209 = scmp.eq.s32.totalorder %s24, 1
    %p210 = por %p208, %p209
    %p211 = scmp.ne.s32.totalorder %s202, %s203
    %p212 = scmp.eq.s32.totalorder %s24, 0
    %p213 = por %p211, %p212
    %p214 = scmp.ne.s32.totalorder %s202, %s203
    %p215 = scmp.eq.s32.totalorder %s25, 1
    %p216 = por %p214, %p215
    %p218 = scmp.ne.s32.totalorder %s203, %s217
    %p219 = scmp.eq.s32.totalorder %s25, 0
    %p220 = por %p218, %p219
    %s222 = sadd.s32 %s221, 1
    %p225 = scmp.eq.s32.totalorder %s19, 1
    %p226 = scmp.ne.s32.totalorder %s221, %s223
    %p227 = scmp.eq.s32.totalorder %s19, 0
    %p228 = por %p226, %p227
    %p229 = scmp.ne.s32.totalorder %s221, %s223
    %p230 = scmp.eq.s32.totalorder %s24, 1
    %p231 = por %p229, %p230
    %p232 = scmp.ne.s32.totalorder %s223, %s224
    %p233 = scmp.eq.s32.totalorder %s24, 0
    %p234 = por %p232, %p233
    %p235 = scmp.ne.s32.totalorder %s223, %s224
    %p236 = scmp.eq.s32.totalorder %s25, 1
    %p237 = por %p235, %p236
    %p239 = scmp.ne.s32.totalorder %s224, %s238
    %p240 = scmp.eq.s32.totalorder %s25, 0
    %p241 = por %p239, %p240
    %s243 = sadd.s32 %s242, 1
    %p246 = scmp.eq.s32.totalorder %s19, 1
    %p247 = scmp.ne.s32.totalorder %s242, %s244
    %p248 = scmp.eq.s32.totalorder %s19, 0
    %p249 = por %p247, %p248
    %p250 = scmp.ne.s32.totalorder %s242, %s244
    %p251 = scmp.eq.s32.totalorder %s24, 1
    %p252 = por %p250, %p251
    %p253 = scmp.ne.s32.totalorder %s244, %s245
    %p254 = scmp.eq.s32.totalorder %s24, 0
    %p255 = por %p253, %p254
    %p256 = scmp.ne.s32.totalorder %s244, %s245
    %p257 = scmp.eq.s32.totalorder %s25, 1
    %p258 = por %p256, %p257
    %p260 = scmp.ne.s32.totalorder %s245, %s259
    %p261 = scmp.eq.s32.totalorder %s25, 0
    %p262 = por %p260, %p261
    %s264 = sadd.s32 %s263, 1
    %p267 = scmp.eq.s32.totalorder %s19, 1
    %p268 = scmp.ne.s32.totalorder %s263, %s265
    %p269 = scmp.eq.s32.totalorder %s19, 0
    %p270 = por %p268, %p269
    %p271 = scmp.ne.s32.totalorder %s263, %s265
    %p272 = scmp.eq.s32.totalorder %s24, 1
    %p273 = por %p271, %p272
    %p274 = scmp.ne.s32.totalorder %s265, %s266
    %p275 = scmp.eq.s32.totalorder %s24, 0
    %p276 = por %p274, %p275
    %p277 = scmp.ne.s32.totalorder %s265, %s266
    %p278 = scmp.eq.s32.totalorder %s25, 1
    %p279 = por %p277, %p278
    %p281 = scmp.ne.s32.totalorder %s266, %s280
    %p282 = scmp.eq.s32.totalorder %s25, 0
    %p283 = por %p281, %p282
    %s285 = sadd.s32 %s284, 1
    %p288 = scmp.eq.s32.totalorder %s19, 1
    %p289 = scmp.ne.s32.totalorder %s284, %s286
    %p290 = scmp.eq.s32.totalorder %s19, 0
    %p291 = por %p289, %p290
    %p292 = scmp.ne.s32.totalorder %s284, %s286
    %p293 = scmp.eq.s32.totalorder %s24, 1
    %p294 = por %p292, %p293
    %p295 = scmp.ne.s32.totalorder %s286, %s287
    %p296 = scmp.eq.s32.totalorder %s24, 0
    %p297 = por %p295, %p296
    %p298 = scmp.ne.s32.totalorder %s286, %s287
    %p299 = scmp.eq.s32.totalorder %s25, 1
    %p300 = por %p298, %p299
    %p302 = scmp.ne.s32.totalorder %s287, %s301
    %p303 = scmp.eq.s32.totalorder %s25, 0
    %p304 = por %p302, %p303
    %s305 = ssub.s32 %s19, %s26
    %p306 = scmp.eq.s32.totalorder %s305, 0
    %s308 = sadd.s32 %s307, 1
    %s309 = scalar_select %p306, %s307, %s308
    %p312 = pneg %p306
    %p313 = scmp.eq.s32.totalorder %s19, 1
    %p314 = por %p312, %p313
    %p315 = scmp.ne.s32.totalorder %s307, %s310
    %p316 = scmp.eq.s32.totalorder %s19, 0
    %p317 = por %p315, %p316
    %p318 = scmp.ne.s32.totalorder %s307, %s310
    %p319 = scmp.eq.s32.totalorder %s24, 1
    %p320 = por %p318, %p319
    %p321 = scmp.ne.s32.totalorder %s310, %s311
    %p322 = scmp.eq.s32.totalorder %s24, 0
    %p323 = por %p321, %p322
    %p324 = scmp.ne.s32.totalorder %s310, %s311
    %p325 = scmp.eq.s32.totalorder %s25, 1
    %p326 = por %p324, %p325
    %p328 = scmp.ne.s32.totalorder %s311, %s327
    %p329 = scmp.eq.s32.totalorder %s25, 0
    %p330 = por %p328, %p329
    %p331 = scmp.le.s32.totalorder 1, %s19
    %p332 = scmp.lt.s32.totalorder %s19, 3
    %p333 = pnand %p331, %p332
    %p334 = pneg %p333
    // Predicated region
    $region9: #{_lambda_.1} parent=5 // pred_check
      _
    $region10: #{_lambda_.1} parent=5 // pred_check_branch
      %336 = sbr.rel (%p333) target = $region12
    $region11: #{_lambda_.1} parent=5 // pred_region
      %s337 = ssub.s32 %s19, 1
      // Predicated region
      $region13: #{_lambda_.1} parent=11 // pred_check
        %p338 = pneg %p66
      $region14: #{_lambda_.1} parent=11 // pred_check_branch
        %340 = sbr.rel (%p338) target = $region16
      $region15: #{_lambda_.1} parent=11 // pred_region
        _
      $region16: #{_lambda_.1} parent=11 // pred_fallthru
        _
      // Predicated region
      $region17: #{_lambda_.1} parent=11 // pred_check
        %p341 = pneg %p87
      $region18: #{_lambda_.1} parent=11 // pred_check_branch
        %343 = sbr.rel (%p341) target = $region20
      $region19: #{_lambda_.1} parent=11 // pred_region
        _
      $region20: #{_lambda_.1} parent=11 // pred_fallthru
        _
      // Predicated region
      $region21: #{_lambda_.1} parent=11 // pred_check
        %p344 = pneg %p108
      $region22: #{_lambda_.1} parent=11 // pred_check_branch
        %346 = sbr.rel (%p344) target = $region24
      $region23: #{_lambda_.1} parent=11 // pred_region
        _
      $region24: #{_lambda_.1} parent=11 // pred_fallthru
        _
      // Predicated region
      $region25: #{_lambda_.1} parent=11 // pred_check
        %p347 = pneg %p129
      $region26: #{_lambda_.1} parent=11 // pred_check_branch
        %349 = sbr.rel (%p347) target = $region28
      $region27: #{_lambda_.1} parent=11 // pred_region
        _
      $region28: #{_lambda_.1} parent=11 // pred_fallthru
        _
      // Predicated region
      $region29: #{_lambda_.1} parent=11 // pred_check
        %p350 = pneg %p150
      $region30: #{_lambda_.1} parent=11 // pred_check_branch
        %352 = sbr.rel (%p350) target = $region32
      $region31: #{_lambda_.1} parent=11 // pred_region
        _
      $region32: #{_lambda_.1} parent=11 // pred_fallthru
        _
      // Predicated region
      $region33: #{_lambda_.1} parent=11 // pred_check
        %p353 = pneg %p171
      $region34: #{_lambda_.1} parent=11 // pred_check_branch
        %355 = sbr.rel (%p353) target = $region36
      $region35: #{_lambda_.1} parent=11 // pred_region
        _
      $region36: #{_lambda_.1} parent=11 // pred_fallthru
        _
      // Predicated region
      $region37: #{_lambda_.1} parent=11 // pred_check
        %p356 = pneg %p192
      $region38: #{_lambda_.1} parent=11 // pred_check_branch
        %358 = sbr.rel (%p356) target = $region40
      $region39: #{_lambda_.1} parent=11 // pred_region
        _
      $region40: #{_lambda_.1} parent=11 // pred_fallthru
        _
      // Predicated region
      $region41: #{_lambda_.1} parent=11 // pred_check
        %p359 = pneg %p213
      $region42: #{_lambda_.1} parent=11 // pred_check_branch
        %361 = sbr.rel (%p359) target = $region44
      $region43: #{_lambda_.1} parent=11 // pred_region
        _
      $region44: #{_lambda_.1} parent=11 // pred_fallthru
        _
      // Predicated region
      $region45: #{_lambda_.1} parent=11 // pred_check
        %p362 = pneg %p234
      $region46: #{_lambda_.1} parent=11 // pred_check_branch
        %364 = sbr.rel (%p362) target = $region48
      $region47: #{_lambda_.1} parent=11 // pred_region
        _
      $region48: #{_lambda_.1} parent=11 // pred_fallthru
        _
      // Predicated region
      $region49: #{_lambda_.1} parent=11 // pred_check
        %p365 = pneg %p255
      $region50: #{_lambda_.1} parent=11 // pred_check_branch
        %367 = sbr.rel (%p365) target = $region52
      $region51: #{_lambda_.1} parent=11 // pred_region
        _
      $region52: #{_lambda_.1} parent=11 // pred_fallthru
        _
      // Predicated region
      $region53: #{_lambda_.1} parent=11 // pred_check
        %p368 = pneg %p276
      $region54: #{_lambda_.1} parent=11 // pred_check_branch
        %370 = sbr.rel (%p368) target = $region56
      $region55: #{_lambda_.1} parent=11 // pred_region
        _
      $region56: #{_lambda_.1} parent=11 // pred_fallthru
        _
      // Predicated region
      $region57: #{_lambda_.1} parent=11 // pred_check
        %p371 = pneg %p297
      $region58: #{_lambda_.1} parent=11 // pred_check_branch
        %373 = sbr.rel (%p371) target = $region60
      $region59: #{_lambda_.1} parent=11 // pred_region
        _
      $region60: #{_lambda_.1} parent=11 // pred_fallthru
        _
    $region12: #{_lambda_.1} parent=5 // pred_fallthru
      _
    %p374 = scmp.lt.s32.totalorder %s19, 2
    // Predicated region
    $region61: #{_lambda_.1} parent=5 // pred_check
      %p375 = pneg %p374
    $region62: #{_lambda_.1} parent=5 // pred_check_branch
      %377 = sbr.rel (%p375) target = $region64
    $region63: #{_lambda_.1} parent=5 // pred_region
      // Predicated region
      $region65: #{_lambda_.1} parent=63 // pred_check
        %p378 = pneg %p39
      $region66: #{_lambda_.1} parent=63 // pred_check_branch
        %380 = sbr.rel (%p378) target = $region68
      $region67: #{_lambda_.1} parent=63 // pred_region
        %p381 = scmp.lt.s32.totalorder %s19, 1
        %s382 = scalar_select %p381, %s19, 1
        %s383 = smul.addr %s382, 4
        %s384 = scalar_lea.vmem %s0, %s383
      $region68: #{_lambda_.1} parent=63 // pred_fallthru
        _
    $region64: #{_lambda_.1} parent=5 // pred_fallthru
      _
    %p385 = scmp.le.s32.totalorder 1, %s19
    %p386 = scmp.lt.s32.totalorder %s19, 3
    %p387 = pnand %p385, %p386
    %p388 = pneg %p387
    // Predicated region
    $region69: #{_lambda_.1} parent=5 // pred_check
      _
    $region70: #{_lambda_.1} parent=5 // pred_check_branch
      %390 = sbr.rel (%p387) target = $region72
    $region71: #{_lambda_.1} parent=5 // pred_region
      %s391 = ssub.s32 %s19, 1
      %p392 = scmp.lt.s32.totalorder %s24, 1
      %s393 = scalar_select %p392, %s24, 1
      %s394 = smul.addr %s393, 4
      %s395 = scalar_lea.vmem %s0, %s394
      %p396 = pneg %p45
      %p397 = pneg %p42
      %p398 = pneg %p66
      %p399 = pneg %p63
      %p400 = pneg %p87
      %p401 = pneg %p84
      %p402 = pneg %p108
      %p403 = pneg %p105
      %p404 = pneg %p129
      %p405 = pneg %p126
      %p406 = pneg %p150
      %p407 = pneg %p147
      %p408 = pneg %p171
      %p409 = pneg %p168
      %p410 = pneg %p192
      %p411 = pneg %p189
      %p412 = pneg %p213
      %p413 = pneg %p210
      %p414 = pneg %p234
      %p415 = pneg %p231
      %p416 = pneg %p255
      %p417 = pneg %p252
      %p418 = pneg %p276
      %p419 = pneg %p273
      %p420 = pneg %p297
      %p421 = pneg %p294
      %p422 = pneg %p323
      %p423 = pneg %p320
      %p424 = scmp.lt.s32.totalorder %s24, 1
      %s425 = scalar_select %p424, %s24, 1
      %s426 = smul.addr %s425, 2
      %s427 = smul.addr %s426, 8
      %s428 = scalar_lea.vmem %s13, %s427
      %p429 = scmp.lt.s32.totalorder %s24, 1
      %s430 = scalar_select %p429, %s24, 1
      %s431 = smul.addr %s430, 4
      %s432 = scalar_lea.vmem %s0, %s431
      %p433 = scmp.lt.s32.totalorder %s24, 1
      %s434 = scalar_select %p433, %s24, 1
      %s435 = smul.addr %s434, 2
      %s436 = smul.addr %s435, 8
      %s437 = scalar_lea.vmem %s13, %s436
      %v438 = vld [vmem:[%s432] sm:$0xf]
      %439 = vst [vmem:[#allocation2] sm:$0xff] 0.0
      %440 = vst [vmem:[#allocation2 + $0x18] sm:$0xff] 0.0
      %441 = vst [vmem:[#allocation2 + $0x10] sm:$0xff] 0.0
      %442 = vst [vmem:[#allocation2 + $0x28] sm:$0xff] 0.0
      %v443 = vld [vmem:[%s1] sm:$0xff]
      %v444 = vld [vmem:[%s1 + $0x8] sm:$0xff]
      %vm445 = vcmask 31744
      %v447 = vsel %vm445, %v443, 0
      %v450 = vsel %vm445, %v444, 0
      %vm452 = vcmask 1043456
      %v454 = vsel %vm452, %v438, 0
      %456 = vmatprep.subr.mxu0 0.0
      %457 = vmatpush1.msra.mxu0 %v454
      %458 = vmatprep.subr.mxu0 0.0
      %459 = vmatpush1.msra.mxu0 0.0
      %460 = vmatprep.subr.mxu0 0.0
      %461 = vmatpush1.msra.mxu0 0.0
      %462 = vmatprep.subr.mxu0 0.0
      %463 = vmatpush1.msra.mxu0 0.0
      %464 = vmatprep.subr.mxu0 0.0
      %465 = vmatpush1.msra.mxu0 0.0
      %466 = vmatprep.subr.mxu0 0.0
      %467 = vmatpush1.msra.mxu0 0.0
      %468 = vmatprep.subr.mxu0 0.0
      %469 = vmatpush1.msra.mxu0 0.0
      %470 = vmatprep.subr.mxu0 0.0
      %471 = vmatpush1.msra.mxu0 0.0
      %472 = vmatprep.subr.mxu0 0.0
      %473 = vmatpush1.msra.mxu0 0.0
      %474 = vmatprep.subr.mxu0 0.0
      %475 = vmatpush1.msra.mxu0 0.0
      %476 = vmatprep.subr.mxu0 0.0
      %477 = vmatpush1.msra.mxu0 0.0
      %478 = vmatprep.subr.mxu0 0.0
      %479 = vmatpush1.msra.mxu0 0.0
      %480 = vmatprep.subr.mxu0 0.0
      %481 = vmatpush1.msra.mxu0 0.0
      %482 = vmatprep.subr.mxu0 0.0
      %483 = vmatpush1.msra.mxu0 0.0
      %484 = vmatprep.subr.mxu0 0.0
      %485 = vmatpush1.msra.mxu0 0.0
      %486 = vmatprep.subr.mxu0 0.0
      %487 = vmatpush1.msra.mxu0 0.0
      %488 = vmatprep.subr.mxu0 0.0
      %489 = vmatpush1.msra.mxu0 0.0
      %490 = vmatprep.subr.mxu0 0.0
      %491 = vmatpush1.msra.mxu0 0.0
      %492 = vmatprep.subr.mxu0 0.0
      %493 = vmatpush1.msra.mxu0 0.0
      %494 = vmatprep.subr.mxu0 0.0
      %495 = vmatpush1.msra.mxu0 0.0
      %496 = vmatprep.subr.mxu0 0.0
      %497 = vmatpush1.msra.mxu0 0.0
      %498 = vmatprep.subr.mxu0 0.0
      %499 = vmatpush1.msra.mxu0 0.0
      %500 = vmatprep.subr.mxu0 0.0
      %501 = vmatpush1.msra.mxu0 0.0
      %502 = vmatprep.subr.mxu0 0.0
      %503 = vmatpush1.msra.mxu0 0.0
      %504 = vmatprep.subr.mxu0 0.0
      %505 = vmatpush1.msra.mxu0 0.0
      %506 = vmatprep.subr.mxu0 0.0
      %507 = vmatpush1.msra.mxu0 0.0
      %508 = vmatprep.subr.mxu0 0.0
      %509 = vmatpush1.msra.mxu0 0.0
      %510 = vmatprep.subr.mxu0 0.0
      %511 = vmatpush1.msra.mxu0 0.0
      %512 = vmatprep.subr.mxu0 0.0
      %513 = vmatpush1.msra.mxu0 0.0
      %514 = vmatprep.subr.mxu0 0.0
      %515 = vmatpush1.msra.mxu0 0.0
      %516 = vmatprep.subr.mxu0 0.0
      %517 = vmatpush1.msra.mxu0 0.0
      %518 = vmatprep.subr.mxu0 0.0
      %519 = vmatpush1.msra.mxu0 0.0
      %520 = vmatprep.mubr.f32.mxu0 0.0
      %521 = vmatmul.mubr.f32.gmra.mrb[0].mxu0 %v447
      %v522 = vpop.f32.mrb[0].mxu0
      %v523 = vadd.f32 0.0, %v522
      %v524 = vpop.f32.mrb[0].mxu0
      %525 = vmatprep.mubr.f32.mxu0 0.0
      %526 = vmatmul.mubr.f32.gmra.mrb[0].mxu0 %v450
      %v527 = vpop.f32.mrb[0].mxu0
      %v528 = vadd.f32 0.0, %v527
      %v529 = vpop.f32.mrb[0].mxu0
      %530 = vdwg.mxu0
      %v531 = vld [vmem:[%s2] sm:$0xff]
      %v532 = vld [vmem:[%s2 + $0x8] sm:$0xff]
      %534 = vset.pattern.permute.xlu0 0
      %535 = vperm.xlu0 %534, %v531
      %v536 = vpop.permute.xlu0 %535
      %539 = vset.pattern.permute.xlu0 0
      %540 = vperm.xlu0 %539, %v532
      %v541 = vpop.permute.xlu0 %540
      %v543 = vmul.f32 %v523, %v536
      %v544 = vmul.f32 %v528, %v541
      %v545 = vld [vmem:[%s3] sm:$0xff]
      %v546 = vld [vmem:[%s3 + $0x8] sm:$0xff]
      %548 = vset.pattern.permute.xlu0 0
      %549 = vperm.xlu0 %548, %v545
      %v550 = vpop.permute.xlu0 %549
      %553 = vset.pattern.permute.xlu0 0
      %554 = vperm.xlu0 %553, %v546
      %v555 = vpop.permute.xlu0 %554
      %v557 = vadd.f32 %v543, %v550
      %v558 = vadd.f32 %v544, %v555
      %v559 = vmax.f32 %v557, 0.0
      %v560 = vmax.f32 %v558, 0.0
      %v561 = vlaneseq
      %v562 = vand.u32 %v561, 127
      %vm563 = vcmp.lt.s32.totalorder %v562, 64
      %v564 = vsel %vm563, 1, 0
      %vm565 = vcmp.eq.s32.totalorder %v564, 1
      %v566 = vsel %vm565, %v559, 0.0
      %v567 = vsel %vm565, %v560, 0.0
      %568 = vst [vmem:[#allocation2 + $0x8] sm:$0xff] %v566
      %569 = vst [vmem:[#allocation2 + $0x20] sm:$0xff] %v567
      %v570 = vld [vmem:[%s4] sm:$0xff]
      %v571 = vld [vmem:[%s4 + $0x8] sm:$0xff]
      %v572 = vld [vmem:[%s4 + $0x10] sm:$0xff]
      %v573 = vld [vmem:[%s4 + $0x18] sm:$0xff]
      %v574 = vld [vmem:[%s7] sm:$0xff]
      %v575 = vld [vmem:[%s7 + $0x8] sm:$0xff]
      %v576 = vld [vmem:[%s10] sm:$0xff]
      %v577 = vld [vmem:[%s10 + $0x8] sm:$0xff]
      %v578 = vld [vmem:[%s5] sm:$0xff]
      %v579 = vld [vmem:[%s5 + $0x8] sm:$0xff]
      %v580 = vld [vmem:[%s6] sm:$0xff]
      %v581 = vld [vmem:[%s6 + $0x8] sm:$0xff]
      %v582 = vld [vmem:[%s8] sm:$0xff]
      %v583 = vld [vmem:[%s8 + $0x8] sm:$0xff]
      %v584 = vld [vmem:[%s9] sm:$0xff]
      %v585 = vld [vmem:[%s9 + $0x8] sm:$0xff]
      %v586 = vld [vmem:[%s11] sm:$0xff]
      %v587 = vld [vmem:[%s11 + $0x8] sm:$0xff]
      %v588 = vld [vmem:[%s12] sm:$0xff]
      %v589 = vld [vmem:[%s12 + $0x8] sm:$0xff]
      %vm590 = vcmp.lt.s32.totalorder %v562, 0
      %v591 = vsub.s32 0, %v562
      %v592 = vsel %vm590, %v591, %v562
      %v593 = vshrl.u32 %v592, 3
      %v594 = vand.u32 %v592, 7
      %v595 = vsub.s32 0, %v594
      %v596 = vsel %vm590, %v595, %v594
      %vm597 = vcmp.ne.s32.totalorder %v596, 0
      %vm598 = vcmp.lt.s32.totalorder %v596, 0
      %vm599 = vmand %vm598, %vm597
      %v600 = vadd.s32 %v596, 8
      %v601 = vsel %vm599, %v600, %v596
      %vm602 = vcmp.ne.s32.totalorder %v601, 0
      %vm603 = vcmp.ne.s32.totalorder %v601, 7
      %v604 = vld [vmem:[#allocation2] sm:$0xff]
      %v605 = vld [vmem:[#allocation2 + $0x8] sm:$0xff]
      %v606 = vld [vmem:[#allocation2 + $0x18] sm:$0xff]
      %v607 = vld [vmem:[#allocation2 + $0x20] sm:$0xff]
      %v608 = vsel %vm602, 1, 0
      %vm609 = vcmp.eq.s32.totalorder %v608, 1
      %614 = vrot.lane.b32.xlu0 %v604, 9
      %v615 = vpop.permute.xlu0 %614
      %616 = vrot.lane.b32.xlu0 %v605, 9
      %v617 = vpop.permute.xlu0 %616
      %618 = vrot.lane.b32.xlu0 %v606, 9
      %v619 = vpop.permute.xlu0 %618
      %620 = vrot.lane.b32.xlu0 %v607, 9
      %v621 = vpop.permute.xlu0 %620
      %vm622 = vcmask 72704
      %v623 = vsel %vm622, %v615, %v617
      %v624 = vsel %vm622, %v619, %v621
      %v627 = vsel %vm609, %v623, 0.0
      %v628 = vsel %vm609, %v624, 0.0
      %629 = vst [vmem:[#allocation3] sm:$0xff] %v627
      %630 = vst [vmem:[#allocation3 + $0x8] sm:$0xff] %v628
      %v631 = vld [vmem:[#allocation2] sm:$0xff]
      %v632 = vld [vmem:[#allocation2 + $0x8] sm:$0xff]
      %v633 = vld [vmem:[#allocation2 + $0x18] sm:$0xff]
      %v634 = vld [vmem:[#allocation2 + $0x20] sm:$0xff]
      %639 = vrot.lane.b32.xlu0 %v631, 8
      %v640 = vpop.permute.xlu0 %639
      %641 = vrot.lane.b32.xlu0 %v632, 8
      %v642 = vpop.permute.xlu0 %641
      %643 = vrot.lane.b32.xlu0 %v633, 8
      %v644 = vpop.permute.xlu0 %643
      %645 = vrot.lane.b32.xlu0 %v634, 8
      %v646 = vpop.permute.xlu0 %645
      %vm647 = vcmask 64512
      %v648 = vsel %vm647, %v640, %v642
      %v649 = vsel %vm647, %v644, %v646
      %652 = vst [vmem:[#allocation3 + $0x10] sm:$0xff] %v648
      %653 = vst [vmem:[#allocation3 + $0x18] sm:$0xff] %v649
      %v654 = vld [vmem:[#allocation2] sm:$0xff]
      %v655 = vld [vmem:[#allocation2 + $0x8] sm:$0xff]
      %v656 = vld [vmem:[#allocation2 + $0x18] sm:$0xff]
      %v657 = vld [vmem:[#allocation2 + $0x20] sm:$0xff]
      %v658 = vsel %vm603, 1, 0
      %vm659 = vcmp.eq.s32.totalorder %v658, 1
      %664 = vrot.lane.b32.xlu0 %v654, 7
      %v665 = vpop.permute.xlu0 %664
      %666 = vrot.lane.b32.xlu0 %v655, 7
      %v667 = vpop.permute.xlu0 %666
      %668 = vrot.lane.b32.xlu0 %v656, 7
      %v669 = vpop.permute.xlu0 %668
      %670 = vrot.lane.b32.xlu0 %v657, 7
      %v671 = vpop.permute.xlu0 %670
      %vm672 = vcmask 56320
      %v673 = vsel %vm672, %v665, %v667
      %v674 = vsel %vm672, %v669, %v671
      %v677 = vsel %vm659, %v673, 0.0
      %v678 = vsel %vm659, %v674, 0.0
      %679 = vst [vmem:[#allocation3 + $0x20] sm:$0xff] %v677
      %680 = vst [vmem:[#allocation3 + $0x28] sm:$0xff] %v678
      %v681 = vld [vmem:[#allocation2] sm:$0xff]
      %v682 = vld [vmem:[#allocation2 + $0x8] sm:$0xff]
      %v683 = vld [vmem:[#allocation2 + $0x18] sm:$0xff]
      %v684 = vld [vmem:[#allocation2 + $0x20] sm:$0xff]
      %689 = vrot.lane.b32.xlu0 %v681, 1
      %v690 = vpop.permute.xlu0 %689
      %691 = vrot.lane.b32.xlu0 %v682, 1
      %v692 = vpop.permute.xlu0 %691
      %693 = vrot.lane.b32.xlu0 %v683, 1
      %v694 = vpop.permute.xlu0 %693
      %695 = vrot.lane.b32.xlu0 %v684, 1
      %v696 = vpop.permute.xlu0 %695
      %vm697 = vcmask 7168
      %v698 = vsel %vm697, %v690, %v692
      %v699 = vsel %vm697, %v694, %v696
      %v702 = vsel %vm609, %v698, 0.0
      %v703 = vsel %vm609, %v699, 0.0
      %704 = vst [vmem:[#allocation3 + $0x30] sm:$0xff] %v702
      %705 = vst [vmem:[#allocation3 + $0x38] sm:$0xff] %v703
      %v706 = vld [vmem:[#allocation2 + $0x8] sm:$0xff]
      %v707 = vld [vmem:[#allocation2 + $0x20] sm:$0xff]
      %708 = vst [vmem:[#allocation3 + $0x40] sm:$0xff] %v706
      %709 = vst [vmem:[#allocation3 + $0x48] sm:$0xff] %v707
      %v710 = vld [vmem:[#allocation2 + $0x8] sm:$0xff]
      %v711 = vld [vmem:[#allocation2 + $0x10] sm:$0xff]
      %v712 = vld [vmem:[#allocation2 + $0x20] sm:$0xff]
      %v713 = vld [vmem:[#allocation2 + $0x28] sm:$0xff]
      %718 = vrot.lane.b32.xlu0 %v710, 127
      %v719 = vpop.permute.xlu0 %718
      %720 = vrot.lane.b32.xlu0 %v711, 127
      %v721 = vpop.permute.xlu0 %720
      %722 = vrot.lane.b32.xlu0 %v712, 127
      %v723 = vpop.permute.xlu0 %722
      %724 = vrot.lane.b32.xlu0 %v713, 127
      %v725 = vpop.permute.xlu0 %724
      %vm726 = vcmask 1039360
      %v727 = vsel %vm726, %v719, %v721
      %v728 = vsel %vm726, %v723, %v725
      %v731 = vsel %vm659, %v727, 0.0
      %v732 = vsel %vm659, %v728, 0.0
      %733 = vst [vmem:[#allocation3 + $0x50] sm:$0xff] %v731
      %734 = vst [vmem:[#allocation3 + $0x58] sm:$0xff] %v732
      %v735 = vld [vmem:[#allocation2 + $0x8] sm:$0xff]
      %v736 = vld [vmem:[#allocation2 + $0x10] sm:$0xff]
      %v737 = vld [vmem:[#allocation2 + $0x20] sm:$0xff]
      %v738 = vld [vmem:[#allocation2 + $0x28] sm:$0xff]
      %743 = vrot.lane.b32.xlu0 %v735, 121
      %v744 = vpop.permute.xlu0 %743
      %745 = vrot.lane.b32.xlu0 %v736, 121
      %v746 = vpop.permute.xlu0 %745
      %747 = vrot.lane.b32.xlu0 %v737, 121
      %v748 = vpop.permute.xlu0 %747
      %749 = vrot.lane.b32.xlu0 %v738, 121
      %v750 = vpop.permute.xlu0 %749
      %vm751 = vcmask 990208
      %v752 = vsel %vm751, %v744, %v746
      %v753 = vsel %vm751, %v748, %v750
      %v756 = vsel %vm609, %v752, 0.0
      %v757 = vsel %vm609, %v753, 0.0
      %758 = vst [vmem:[#allocation3 + $0x60] sm:$0xff] %v756
      %759 = vst [vmem:[#allocation3 + $0x68] sm:$0xff] %v757
      %v760 = vld [vmem:[#allocation2 + $0x8] sm:$0xff]
      %v761 = vld [vmem:[#allocation2 + $0x10] sm:$0xff]
      %v762 = vld [vmem:[#allocation2 + $0x20] sm:$0xff]
      %v763 = vld [vmem:[#allocation2 + $0x28] sm:$0xff]
      %768 = vrot.lane.b32.xlu0 %v760, 120
      %v769 = vpop.permute.xlu0 %768
      %770 = vrot.lane.b32.xlu0 %v761, 120
      %v771 = vpop.permute.xlu0 %770
      %772 = vrot.lane.b32.xlu0 %v762, 120
      %v773 = vpop.permute.xlu0 %772
      %774 = vrot.lane.b32.xlu0 %v763, 120
      %v775 = vpop.permute.xlu0 %774
      %vm776 = vcmask 982016
      %v777 = vsel %vm776, %v769, %v771
      %v778 = vsel %vm776, %v773, %v775
      %781 = vst [vmem:[#allocation3 + $0x70] sm:$0xff] %v777
      %782 = vst [vmem:[#allocation3 + $0x78] sm:$0xff] %v778
      %v783 = vld [vmem:[#allocation2 + $0x8] sm:$0xff]
      %v784 = vld [vmem:[#allocation2 + $0x10] sm:$0xff]
      %v785 = vld [vmem:[#allocation2 + $0x20] sm:$0xff]
      %v786 = vld [vmem:[#allocation2 + $0x28] sm:$0xff]
      %791 = vrot.lane.b32.xlu0 %v783, 119
      %v792 = vpop.permute.xlu0 %791
      %793 = vrot.lane.b32.xlu0 %v784, 119
      %v794 = vpop.permute.xlu0 %793
      %795 = vrot.lane.b32.xlu0 %v785, 119
      %v796 = vpop.permute.xlu0 %795
      %797 = vrot.lane.b32.xlu0 %v786, 119
      %v798 = vpop.permute.xlu0 %797
      %vm799 = vcmask 973824
      %v800 = vsel %vm799, %v792, %v794
      %v801 = vsel %vm799, %v796, %v798
      %v804 = vsel %vm659, %v800, 0.0
      %v805 = vsel %vm659, %v801, 0.0
      %806 = vst [vmem:[#allocation3 + $0x80] sm:$0xff] %v804
      %807 = vst [vmem:[#allocation3 + $0x88] sm:$0xff] %v805
      %v808 = vld [vmem:[#allocation3] sm:$0xff]
      %v809 = vld [vmem:[#allocation3 + $0x8] sm:$0xff]
      %v810 = vld [vmem:[#allocation3 + $0x10] sm:$0xff]
      %v811 = vld [vmem:[#allocation3 + $0x18] sm:$0xff]
      %v812 = vld [vmem:[#allocation3 + $0x20] sm:$0xff]
      %v813 = vld [vmem:[#allocation3 + $0x28] sm:$0xff]
      %v814 = vld [vmem:[#allocation3 + $0x30] sm:$0xff]
      %v815 = vld [vmem:[#allocation3 + $0x38] sm:$0xff]
      %v816 = vld [vmem:[#allocation3 + $0x40] sm:$0xff]
      %v817 = vld [vmem:[#allocation3 + $0x48] sm:$0xff]
      %v818 = vld [vmem:[#allocation3 + $0x50] sm:$0xff]
      %v819 = vld [vmem:[#allocation3 + $0x58] sm:$0xff]
      %v820 = vld [vmem:[#allocation3 + $0x60] sm:$0xff]
      %v821 = vld [vmem:[#allocation3 + $0x68] sm:$0xff]
      %v822 = vld [vmem:[#allocation3 + $0x70] sm:$0xff]
      %v823 = vld [vmem:[#allocation3 + $0x78] sm:$0xff]
      %v824 = vld [vmem:[#allocation3 + $0x80] sm:$0xff]
      %v825 = vld [vmem:[#allocation3 + $0x88] sm:$0xff]
      %vm826 = vcmask 130048
      %v828 = vsel %vm826, %v571, 0
      %v831 = vsel %vm826, %v573, 0
      %833 = vmatprep.subr.mxu0 0.0
      %834 = vmatpush1.msra.mxu0 %v808
      %835 = vmatprep.subr.mxu0 0.0
      %836 = vmatpush1.msra.mxu0 %v809
      %837 = vmatprep.subr.mxu0 0.0
      %838 = vmatpush1.msra.mxu0 %v810
      %839 = vmatprep.subr.mxu0 0.0
      %840 = vmatpush1.msra.mxu0 %v811
      %841 = vmatprep.subr.mxu0 0.0
      %842 = vmatpush1.msra.mxu0 %v812
      %843 = vmatprep.subr.mxu0 0.0
      %844 = vmatpush1.msra.mxu0 %v813
      %845 = vmatprep.subr.mxu0 0.0
      %846 = vmatpush1.msra.mxu0 %v814
      %847 = vmatprep.subr.mxu0 0.0
      %848 = vmatpush1.msra.mxu0 %v815
      %849 = vmatprep.subr.mxu0 0.0
      %850 = vmatpush1.msra.mxu0 %v816
      %851 = vmatprep.subr.mxu0 0.0
      %852 = vmatpush1.msra.mxu0 %v817
      %853 = vmatprep.subr.mxu0 0.0
      %854 = vmatpush1.msra.mxu0 %v818
      %855 = vmatprep.subr.mxu0 0.0
      %856 = vmatpush1.msra.mxu0 %v819
      %857 = vmatprep.subr.mxu0 0.0
      %858 = vmatpush1.msra.mxu0 %v820
      %859 = vmatprep.subr.mxu0 0.0
      %860 = vmatpush1.msra.mxu0 %v821
      %861 = vmatprep.subr.mxu0 0.0
      %862 = vmatpush1.msra.mxu0 %v822
      %863 = vmatprep.subr.mxu0 0.0
      %864 = vmatpush1.msra.mxu0 %v823
      %865 = vmatprep.subr.mxu0 0.0
      %866 = vmatpush1.msra.mxu0 %v824
      %867 = vmatprep.subr.mxu0 0.0
      %868 = vmatpush1.msra.mxu0 %v825
      %869 = vmatprep.subr.mxu0 0.0
      %870 = vmatpush1.msra.mxu0 0.0
      %871 = vmatprep.subr.mxu0 0.0
      %872 = vmatpush1.msra.mxu0 0.0
      %873 = vmatprep.subr.mxu0 0.0
      %874 = vmatpush1.msra.mxu0 0.0
      %875 = vmatprep.subr.mxu0 0.0
      %876 = vmatpush1.msra.mxu0 0.0
      %877 = vmatprep.subr.mxu0 0.0
      %878 = vmatpush1.msra.mxu0 0.0
      %879 = vmatprep.subr.mxu0 0.0
      %880 = vmatpush1.msra.mxu0 0.0
      %881 = vmatprep.subr.mxu0 0.0
      %882 = vmatpush1.msra.mxu0 0.0
      %883 = vmatprep.subr.mxu0 0.0
      %884 = vmatpush1.msra.mxu0 0.0
      %885 = vmatprep.subr.mxu0 0.0
      %886 = vmatpush1.msra.mxu0 0.0
      %887 = vmatprep.subr.mxu0 0.0
      %888 = vmatpush1.msra.mxu0 0.0
      %889 = vmatprep.subr.mxu0 0.0
      %890 = vmatpush1.msra.mxu0 0.0
      %891 = vmatprep.subr.mxu0 0.0
      %892 = vmatpush1.msra.mxu0 0.0
      %893 = vmatprep.subr.mxu0 0.0
      %894 = vmatpush1.msra.mxu0 0.0
      %895 = vmatprep.subr.mxu0 0.0
      %896 = vmatpush1.msra.mxu0 0.0
      %897 = vmatprep.mubr.f32.mxu0 %v828
      %898 = vmatmul.mubr.f32.gmra.mrb[0].mxu0 %v570
      %v899 = vpop.f32.mrb[0].mxu0
      %v900 = vadd.f32 0.0, %v899
      %v901 = vpop.f32.mrb[0].mxu0
      %902 = vmatprep.mubr.f32.mxu0 %v831
      %903 = vmatmul.mubr.f32.gmra.mrb[0].mxu0 %v572
      %v904 = vpop.f32.mrb[0].mxu0
      %v905 = vadd.f32 0.0, %v904
      %v906 = vpop.f32.mrb[0].mxu0
      %907 = vdwg.mxu0
      %909 = vset.pattern.permute.xlu0 0
      %910 = vperm.xlu0 %909, %v578
      %v911 = vpop.permute.xlu0 %910
      %914 = vset.pattern.permute.xlu0 0
      %915 = vperm.xlu0 %914, %v579
      %v916 = vpop.permute.xlu0 %915
      %v918 = vmul.f32 %v900, %v911
      %v919 = vmul.f32 %v905, %v916
      %921 = vset.pattern.permute.xlu0 0
      %922 = vperm.xlu0 %921, %v580
      %v923 = vpop.permute.xlu0 %922
      %926 = vset.pattern.permute.xlu0 0
      %927 = vperm.xlu0 %926, %v581
      %v928 = vpop.permute.xlu0 %927
      %v930 = vadd.f32 %v918, %v923
      %v931 = vadd.f32 %v919, %v928
      %v932 = vmax.f32 %v930, 0.0
      %v933 = vmax.f32 %v931, 0.0
      %v935 = vsel %vm826, %v574, 0
      %v938 = vsel %vm826, %v575, 0
      %940 = vmatprep.subr.mxu0 0.0
      %941 = vmatpush1.msra.mxu0 %v932
      %942 = vmatprep.subr.mxu0 0.0
      %943 = vmatpush1.msra.mxu0 %v933
      %944 = vmatprep.subr.mxu0 0.0
      %945 = vmatpush1.msra.mxu0 0.0
      %946 = vmatprep.subr.mxu0 0.0
      %947 = vmatpush1.msra.mxu0 0.0
      %948 = vmatprep.subr.mxu0 0.0
      %949 = vmatpush1.msra.mxu0 0.0
      %950 = vmatprep.subr.mxu0 0.0
      %951 = vmatpush1.msra.mxu0 0.0
      %952 = vmatprep.subr.mxu0 0.0
      %953 = vmatpush1.msra.mxu0 0.0
      %954 = vmatprep.subr.mxu0 0.0
      %955 = vmatpush1.msra.mxu0 0.0
      %956 = vmatprep.subr.mxu0 0.0
      %957 = vmatpush1.msra.mxu0 0.0
      %958 = vmatprep.subr.mxu0 0.0
      %959 = vmatpush1.msra.mxu0 0.0
      %960 = vmatprep.subr.mxu0 0.0
      %961 = vmatpush1.msra.mxu0 0.0
      %962 = vmatprep.subr.mxu0 0.0
      %963 = vmatpush1.msra.mxu0 0.0
      %964 = vmatprep.subr.mxu0 0.0
      %965 = vmatpush1.msra.mxu0 0.0
      %966 = vmatprep.subr.mxu0 0.0
      %967 = vmatpush1.msra.mxu0 0.0
      %968 = vmatprep.subr.mxu0 0.0
      %969 = vmatpush1.msra.mxu0 0.0
      %970 = vmatprep.subr.mxu0 0.0
      %971 = vmatpush1.msra.mxu0 0.0
      %972 = vmatprep.subr.mxu0 0.0
      %973 = vmatpush1.msra.mxu0 0.0
      %974 = vmatprep.subr.mxu0 0.0
      %975 = vmatpush1.msra.mxu0 0.0
      %976 = vmatprep.subr.mxu0 0.0
      %977 = vmatpush1.msra.mxu0 0.0
      %978 = vmatprep.subr.mxu0 0.0
      %979 = vmatpush1.msra.mxu0 0.0
      %980 = vmatprep.subr.mxu0 0.0
      %981 = vmatpush1.msra.mxu0 0.0
      %982 = vmatprep.subr.mxu0 0.0
      %983 = vmatpush1.msra.mxu0 0.0
      %984 = vmatprep.subr.mxu0 0.0
      %985 = vmatpush1.msra.mxu0 0.0
      %986 = vmatprep.subr.mxu0 0.0
      %987 = vmatpush1.msra.mxu0 0.0
      %988 = vmatprep.subr.mxu0 0.0
      %989 = vmatpush1.msra.mxu0 0.0
      %990 = vmatprep.subr.mxu0 0.0
      %991 = vmatpush1.msra.mxu0 0.0
      %992 = vmatprep.subr.mxu0 0.0
      %993 = vmatpush1.msra.mxu0 0.0
      %994 = vmatprep.subr.mxu0 0.0
      %995 = vmatpush1.msra.mxu0 0.0
      %996 = vmatprep.subr.mxu0 0.0
      %997 = vmatpush1.msra.mxu0 0.0
      %998 = vmatprep.subr.mxu0 0.0
      %999 = vmatpush1.msra.mxu0 0.0
      %1000 = vmatprep.subr.mxu0 0.0
      %1001 = vmatpush1.msra.mxu0 0.0
      %1002 = vmatprep.subr.mxu0 0.0
      %1003 = vmatpush1.msra.mxu0 0.0
      %1004 = vmatprep.mubr.f32.mxu0 0.0
      %1005 = vmatmul.mubr.f32.gmra.mrb[0].mxu0 %v935
      %v1006 = vpop.f32.mrb[0].mxu0
      %v1007 = vadd.f32 0.0, %v1006
      %v1008 = vpop.f32.mrb[0].mxu0
      %1009 = vmatprep.mubr.f32.mxu0 0.0
      %1010 = vmatmul.mubr.f32.gmra.mrb[0].mxu0 %v938
      %v1011 = vpop.f32.mrb[0].mxu0
      %v1012 = vadd.f32 0.0, %v1011
      %v1013 = vpop.f32.mrb[0].mxu0
      %1014 = vdwg.mxu0
      %1016 = vset.pattern.permute.xlu0 0
      %1017 = vperm.xlu0 %1016, %v582
      %v1018 = vpop.permute.xlu0 %1017
      %1021 = vset.pattern.permute.xlu0 0
      %1022 = vperm.xlu0 %1021, %v583
      %v1023 = vpop.permute.xlu0 %1022
      %v1025 = vmul.f32 %v1007, %v1018
      %v1026 = vmul.f32 %v1012, %v1023
      %1028 = vset.pattern.permute.xlu0 0
      %1029 = vperm.xlu0 %1028, %v584
      %v1030 = vpop.permute.xlu0 %1029
      %1033 = vset.pattern.permute.xlu0 0
      %1034 = vperm.xlu0 %1033, %v585
      %v1035 = vpop.permute.xlu0 %1034
      %v1037 = vadd.f32 %v1025, %v1030
      %v1038 = vadd.f32 %v1026, %v1035
      %v1040 = vsel %vm445, %v576, 0
      %v1043 = vsel %vm445, %v577, 0
      %1045 = vmatprep.subr.mxu0 0.0
      %1046 = vmatpush1.msra.mxu0 %v454
      %1047 = vmatprep.subr.mxu0 0.0
      %1048 = vmatpush1.msra.mxu0 0.0
      %1049 = vmatprep.subr.mxu0 0.0
      %1050 = vmatpush1.msra.mxu0 0.0
      %1051 = vmatprep.subr.mxu0 0.0
      %1052 = vmatpush1.msra.mxu0 0.0
      %1053 = vmatprep.subr.mxu0 0.0
      %1054 = vmatpush1.msra.mxu0 0.0
      %1055 = vmatprep.subr.mxu0 0.0
      %1056 = vmatpush1.msra.mxu0 0.0
      %1057 = vmatprep.subr.mxu0 0.0
      %1058 = vmatpush1.msra.mxu0 0.0
      %1059 = vmatprep.subr.mxu0 0.0
      %1060 = vmatpush1.msra.mxu0 0.0
      %1061 = vmatprep.subr.mxu0 0.0
      %1062 = vmatpush1.msra.mxu0 0.0
      %1063 = vmatprep.subr.mxu0 0.0
      %1064 = vmatpush1.msra.mxu0 0.0
      %1065 = vmatprep.subr.mxu0 0.0
      %1066 = vmatpush1.msra.mxu0 0.0
      %1067 = vmatprep.subr.mxu0 0.0
      %1068 = vmatpush1.msra.mxu0 0.0
      %1069 = vmatprep.subr.mxu0 0.0
      %1070 = vmatpush1.msra.mxu0 0.0
      %1071 = vmatprep.subr.mxu0 0.0
      %1072 = vmatpush1.msra.mxu0 0.0
      %1073 = vmatprep.subr.mxu0 0.0
      %1074 = vmatpush1.msra.mxu0 0.0
      %1075 = vmatprep.subr.mxu0 0.0
      %1076 = vmatpush1.msra.mxu0 0.0
      %1077 = vmatprep.subr.mxu0 0.0
      %1078 = vmatpush1.msra.mxu0 0.0
      %1079 = vmatprep.subr.mxu0 0.0
      %1080 = vmatpush1.msra.mxu0 0.0
      %1081 = vmatprep.subr.mxu0 0.0
      %1082 = vmatpush1.msra.mxu0 0.0
      %1083 = vmatprep.subr.mxu0 0.0
      %1084 = vmatpush1.msra.mxu0 0.0
      %1085 = vmatprep.subr.mxu0 0.0
      %1086 = vmatpush1.msra.mxu0 0.0
      %1087 = vmatprep.subr.mxu0 0.0
      %1088 = vmatpush1.msra.mxu0 0.0
      %1089 = vmatprep.subr.mxu0 0.0
      %1090 = vmatpush1.msra.mxu0 0.0
      %1091 = vmatprep.subr.mxu0 0.0
      %1092 = vmatpush1.msra.mxu0 0.0
      %1093 = vmatprep.subr.mxu0 0.0
      %1094 = vmatpush1.msra.mxu0 0.0
      %1095 = vmatprep.subr.mxu0 0.0
      %1096 = vmatpush1.msra.mxu0 0.0
      %1097 = vmatprep.subr.mxu0 0.0
      %1098 = vmatpush1.msra.mxu0 0.0
      %1099 = vmatprep.subr.mxu0 0.0
      %1100 = vmatpush1.msra.mxu0 0.0
      %1101 = vmatprep.subr.mxu0 0.0
      %1102 = vmatpush1.msra.mxu0 0.0
      %1103 = vmatprep.subr.mxu0 0.0
      %1104 = vmatpush1.msra.mxu0 0.0
      %1105 = vmatprep.subr.mxu0 0.0
      %1106 = vmatpush1.msra.mxu0 0.0
      %1107 = vmatprep.subr.mxu0 0.0
      %1108 = vmatpush1.msra.mxu0 0.0
      %1109 = vmatprep.mubr.f32.mxu0 0.0
      %1110 = vmatmul.mubr.f32.gmra.mrb[0].mxu0 %v1040
      %v1111 = vpop.f32.mrb[0].mxu0
      %v1112 = vadd.f32 0.0, %v1111
      %v1113 = vpop.f32.mrb[0].mxu0
      %1114 = vmatprep.mubr.f32.mxu0 0.0
      %1115 = vmatmul.mubr.f32.gmra.mrb[0].mxu0 %v1043
      %v1116 = vpop.f32.mrb[0].mxu0
      %v1117 = vadd.f32 0.0, %v1116
      %v1118 = vpop.f32.mrb[0].mxu0
      %1119 = vdwg.mxu0
      %1121 = vset.pattern.permute.xlu0 0
      %1122 = vperm.xlu0 %1121, %v586
      %v1123 = vpop.permute.xlu0 %1122
      %1126 = vset.pattern.permute.xlu0 0
      %1127 = vperm.xlu0 %1126, %v587
      %v1128 = vpop.permute.xlu0 %1127
      %v1130 = vmul.f32 %v1112, %v1123
      %v1131 = vmul.f32 %v1117, %v1128
      %1133 = vset.pattern.permute.xlu0 0
      %1134 = vperm.xlu0 %1133, %v588
      %v1135 = vpop.permute.xlu0 %1134
      %1138 = vset.pattern.permute.xlu0 0
      %1139 = vperm.xlu0 %1138, %v589
      %v1140 = vpop.permute.xlu0 %1139
      %v1142 = vadd.f32 %v1130, %v1135
      %v1143 = vadd.f32 %v1131, %v1140
      %v1144 = vadd.f32 %v1037, %v1142
      %v1145 = vadd.f32 %v1038, %v1143
      %v1146 = vmax.f32 %v1144, 0.0
      %v1147 = vmax.f32 %v1145, 0.0
      %1148 = vst [vmem:[%s437] sm:$0xff] %v1146
      %1149 = vst [vmem:[%s437 + $0x8] sm:$0xff] %v1147
      %p1150 = scmp.lt.s32.totalorder %s24, 1
      %s1151 = scalar_select %p1150, %s24, 1
      %s1152 = smul.addr %s1151, 2
      %s1153 = smul.addr %s1152, 8
      %s1154 = scalar_lea.vmem %s13, %s1153
      // Predicated region
      $region73: #{_lambda_.1} parent=71 // pred_check
        %p1155 = pneg %p320
      $region74: #{_lambda_.1} parent=71 // pred_check_branch
        %1157 = sbr.rel (%p1155) target = $region76
      $region75: #{_lambda_.1} parent=71 // pred_region
        _
      $region76: #{_lambda_.1} parent=71 // pred_fallthru
        _
    $region72: #{_lambda_.1} parent=5 // pred_fallthru
      _
    %p1158 = scmp.le.s32.totalorder 2, %s19
    // Predicated region
    $region77: #{_lambda_.1} parent=5 // pred_check
      %p1159 = pneg %p1158
    $region78: #{_lambda_.1} parent=5 // pred_check_branch
      %1161 = sbr.rel (%p1159) target = $region80
    $region79: #{_lambda_.1} parent=5 // pred_region
      %s1162 = ssub.s32 %s19, 2
      // Predicated region
      $region81: #{_lambda_.1} parent=79 // pred_check
        %p1163 = pneg %p326
      $region82: #{_lambda_.1} parent=79 // pred_check_branch
        %1165 = sbr.rel (%p1163) target = $region84
      $region83: #{_lambda_.1} parent=79 // pred_region
        %p1166 = scmp.lt.s32.totalorder %s25, 1
        %s1167 = scalar_select %p1166, %s25, 1
        %s1168 = smul.addr %s1167, 2
        %s1169 = smul.addr %s1168, 8
        %s1170 = scalar_lea.vmem %s13, %s1169
      $region84: #{_lambda_.1} parent=79 // pred_fallthru
        _
    $region80: #{_lambda_.1} parent=5 // pred_fallthru
      _
  $region6: #{_lambda_.1} parent=0 // loop_footer
    %s23 = sadd.s32 1, %s19
  $region7: #{_lambda_.1} parent=0 // loop_footer_branch
    %18 = sbr.rel target = $region3
  $region8: #{_lambda_.1} parent=0 // loop_exit
    _

</llo_original>
